<compile_context>
chip_gen: v5e
topology: v5e:2x2
jax: 0.10.0
libtpu: 0.0.40
codegen_flags: <defaults>
</compile_context>

<pallas_src>
import jax
import jax.numpy as jnp
from jax.experimental import pallas as pl
from jax.experimental.pallas import tpu as pltpu


# Packed parameter slab layout, f32 (48 rows x 128 lanes):
#   rows  0:32, lanes  0:16  : [conv_w0^T | conv_w1^T] * bn1_scale   (32 x 16)
#   rows 32:40, lanes  0:32  : lstm W_ih^T                           ( 8 x 32)
#   rows 32:40, lanes 32:64  : lstm W_hh^T                           ( 8 x 32)
#   rows 40:48, lanes  0:96  : [dw1 | dw2 | dw0] * bn2_scale         ( 8 x 96)
#   row  40,    lanes 96:104 : bn1 shift (conv bias folded)
#   row  41,    lanes 96:128 : lstm bias (b_ih + b_hh)
#   row  42,    lanes 96:128 : bn2 shift (deconv bias folded)
PARAM_ROWS = 48


def sae_kernel(x_ref, w_ref, out_ref, hs_ref):
    # x_ref  : (L, B, 32)   one batch tile, time-major, channels-last
    # w_ref  : (48, 128)    packed parameter slab (BN scales folded into weights)
    # out_ref: (2*Tp, B, 32)
    # hs_ref : (Tp, B, 8)   VMEM scratch holding all LSTM hidden states
    L, B, Cin = x_ref.shape
    Tp = hs_ref.shape[0]
    H = 8

    W = w_ref[...]
    wc = W[0:32, 0:16]                               # [w0 | w1] * s1  (32, 16)
    wih = W[32:40, 0:32]                             # (8, 32)
    whh = W[32:40, 32:64]                            # (8, 32)
    wdec = W[40:48, 0:96]                            # [w1 | w2 | w0] * s2 (8, 96)
    bn1b = W[40:41, 96:104].reshape(1, 1, H)         # BN1 shift (conv bias folded)
    bl = W[41:42, 96:128]                            # (1, 32) lstm bias
    bn2b = W[42:43, 96:128].reshape(1, 1, 32)        # BN2 shift (deconv bias folded)

    # ---- Conv1d(32 -> 8, k=2, pad=1): one matmul over all L*B rows ----------
    # (BN1 scale is already folded into wc.)
    xf = x_ref[...].reshape(L * B, Cin)
    ab = jnp.dot(xf, wc, preferred_element_type=jnp.float32).reshape(L, B, 2 * H)
    a = ab[:, :, 0:H]          # x_t @ w0  -> feeds conv output t+1
    b = ab[:, :, H:2 * H]      # x_t @ w1  -> feeds conv output t
    parts = [b[0:1]]           # y[0]   = 0 @ w0 + x[0] @ w1   (left zero pad)
    if L > 1:
        parts.append(a[0:L - 1] + b[1:L])            # y[1..L-1]
    parts.append(a[L - 1:L])   # y[L]   = x[L-1] @ w0 + 0 @ w1 (right zero pad)
    y = jnp.concatenate(parts, axis=0)               # (L+1, B, 8), scaled conv out

    # ---- MaxPool1d(2,2) first, then BN shift + ReLU (monotone -> commutes) --
    yp = y[0:2 * Tp].reshape(Tp, 2, B, H)
    pooled = jnp.maximum(jnp.maximum(yp[:, 0], yp[:, 1]) + bn1b, 0.0)   # (Tp,B,8)
    # Dropout(p=0.25): identity (eval mode).

    # ---- LSTM(8 -> 8): input projection hoisted out of the recurrence -------
    gx = (jnp.dot(pooled.reshape(Tp * B, H), wih,
                  preferred_element_type=jnp.float32) + bl).reshape(Tp, B, 4 * H)
    h = jnp.zeros((B, H), jnp.float32)
    c = jnp.zeros((B, H), jnp.float32)
    for t in range(Tp):                               # static, unrolled
        g = gx[t] + jnp.dot(h, whh, preferred_element_type=jnp.float32)  # (B, 32)
        s = jax.nn.sigmoid(g)                         # one EUP pass: i, f, o lanes
        gg = jnp.tanh(g[:, 2 * H:3 * H])
        c = s[:, H:2 * H] * c + s[:, 0:H] * gg
        h = s[:, 3 * H:4 * H] * jnp.tanh(c)
        hs_ref[t] = h                                 # park state in VMEM scratch

    # ---- ConvTranspose1d(8->32, k=3, s=2, p=1, op=1): one matmul + interleave
    # (BN2 scale is already folded into wdec.)
    hf = hs_ref[...].reshape(Tp * B, H)
    d = jnp.dot(hf, wdec, preferred_element_type=jnp.float32).reshape(Tp, B, 96)
    even = d[:, :, 0:32]                              # w1 @ h_t   -> position 2t
    odd = d[:, :, 32:64]                              # w2 @ h_t   -> position 2t+1
    if Tp > 1:                                        # + w0 @ h_{t+1} (zero past end)
        odd = odd + jnp.concatenate(
            [d[1:Tp, :, 64:96], jnp.zeros((1, B, 32), jnp.float32)], axis=0)
    out = jnp.concatenate([even[:, None], odd[:, None]],
                          axis=1).reshape(2 * Tp, B, 32)
    # BN shift + ReLU (scale folded); Dropout(0.5) identity; single block store.
    out_ref[...] = jnp.maximum(out + bn2b, 0.0)


def _round_up(a, m):
    return (a + m - 1) // m * m


def sequence_autoencoder_forward(x, packed_w, *, b_tile=256):
    """x: (N, 32, L) float32 (PyTorch NCL). Returns (N, 32, 2*((L+1)//2)).

    b_tile: batch tile per grid step (sublane-aligned automatically).  256 fits
    the default 32 MiB scoped-VMEM on v6e/v7x with double buffering; for larger
    tiles set pltpu.CompilerParams(vmem_limit_bytes=...).  Keep >= 2 grid steps
    when possible so the "parallel" grid axis can feed both v7x TensorCores.
    """
    N, Cin, L = x.shape
    assert Cin == 32
    Lc = L + 1
    Tp = Lc // 2
    Lout = 2 * Tp

    bt = min(_round_up(N, 8), _round_up(b_tile, 8))   # sublane-aligned batch tile
    Np = _round_up(N, bt)

    # Glue: NCL -> time-major channels-last; batch padded to the tile size.
    # (Conv halo padding is handled inside the kernel, not materialized here.)
    x_t = jnp.transpose(x.astype(jnp.float32), (2, 0, 1))        # (L, N, 32)
    if Np != N:
        x_t = jnp.pad(x_t, ((0, 0), (0, Np - N), (0, 0)))

    out_t = pl.pallas_call(
        sae_kernel,
        out_shape=jax.ShapeDtypeStruct((Lout, Np, 32), jnp.float32),
        grid=(Np // bt,),
        in_specs=[
            pl.BlockSpec((L, bt, 32), lambda n: (0, n, 0)),       # batch tile of x
            pl.BlockSpec((PARAM_ROWS, 128), lambda n: (0, 0)),    # packed weights
        ],
        out_specs=pl.BlockSpec((Lout, bt, 32), lambda n: (0, n, 0)),
        scratch_shapes=[pltpu.VMEM((Tp, bt, 8), jnp.float32)],    # LSTM states
        compiler_params=pltpu.CompilerParams(dimension_semantics=("parallel",)),
    )(x_t, packed_w)

    return jnp.transpose(out_t[:, :N, :], (1, 2, 0))              # back to NCL


def init_params(key):
    """Deterministic params matching the PyTorch module, packed into one
    (48, 128) f32 slab.  Eval-mode BatchNorm scales (and conv/deconv biases)
    are folded into the conv / deconv weights and the BN shifts."""
    ks = jax.random.split(key, 12)

    def u(k, shape, fan_in):
        bound = 1.0 / float(fan_in) ** 0.5
        return jax.random.uniform(k, shape, jnp.float32, -bound, bound)

    eps = 1e-5
    conv_w = u(ks[0], (8, 32, 2), 32 * 2)             # Conv1d(32, 8, k=2)
    conv_b = u(ks[1], (8,), 32 * 2)
    bn1_g = jax.random.uniform(ks[2], (8,), jnp.float32, 0.5, 1.5)
    bn1_b = u(ks[3], (8,), 8)
    bn1_m = jnp.zeros((8,), jnp.float32)
    bn1_v = jnp.ones((8,), jnp.float32)
    w_ih = u(ks[4], (32, 8), 8)                       # LSTM, gate order i,f,g,o
    w_hh = u(ks[5], (32, 8), 8)
    b_ih = u(ks[6], (32,), 8)
    b_hh = u(ks[7], (32,), 8)
    dconv_w = u(ks[8], (8, 32, 3), 8 * 3)             # ConvTranspose1d(8, 32, k=3)
    dconv_b = u(ks[9], (32,), 8 * 3)
    bn2_g = jax.random.uniform(ks[10], (32,), jnp.float32, 0.5, 1.5)
    bn2_b = u(ks[11], (32,), 32)
    bn2_m = jnp.zeros((32,), jnp.float32)
    bn2_v = jnp.ones((32,), jnp.float32)

    inv1 = bn1_g / jnp.sqrt(bn1_v + eps)              # per conv output channel
    bn1_shift = (conv_b - bn1_m) * inv1 + bn1_b       # conv bias folded into BN1
    inv2 = bn2_g / jnp.sqrt(bn2_v + eps)              # per deconv output channel
    bn2_shift = (dconv_b - bn2_m) * inv2 + bn2_b      # deconv bias folded into BN2

    W = jnp.zeros((PARAM_ROWS, 128), jnp.float32)
    W = W.at[0:32, 0:8].set(conv_w[:, :, 0].T * inv1[None, :])    # scale folded
    W = W.at[0:32, 8:16].set(conv_w[:, :, 1].T * inv1[None, :])
    W = W.at[32:40, 0:32].set(w_ih.T)
    W = W.at[32:40, 32:64].set(w_hh.T)
    W = W.at[40:48, 0:32].set(dconv_w[:, :, 1] * inv2[None, :])   # even tap
    W = W.at[40:48, 32:64].set(dconv_w[:, :, 2] * inv2[None, :])  # odd tap (h_t)
    W = W.at[40:48, 64:96].set(dconv_w[:, :, 0] * inv2[None, :])  # odd tap (h_{t+1})
    W = W.at[40, 96:104].set(bn1_shift)
    W = W.at[41, 96:128].set(b_ih + b_hh)
    W = W.at[42, 96:128].set(bn2_shift)
    return W


if __name__ == "__main__":
    key = jax.random.PRNGKey(0)
    kx, kp = jax.random.split(key)
    # Input follows the PyTorch convention: (batch=2, channels=32, length=16)
    x = jax.random.normal(kx, (2, 32, 16), jnp.float32)
    packed_w = init_params(kp)

    out = sequence_autoencoder_forward(x, packed_w)
    out = jax.block_until_ready(out)
    assert out.shape == (2, 32, 16), out.shape
    assert bool(jnp.all(jnp.isfinite(out)))
    print("KERNEL_OK")
</pallas_src>

<mosaic_0001>
module attributes {stable_mosaic.version = 11 : i64} {
  func.func @sae_kernel(%arg0: i32, %arg1: memref<16x8x32xf32, #tpu.memory_space<vmem>>, %arg2: memref<48x128xf32, #tpu.memory_space<vmem>>, %arg3: memref<16x8x32xf32, #tpu.memory_space<vmem>>, %arg4: memref<8x8x8xf32, #tpu.memory_space<vmem>>) attributes {dimension_semantics = [#tpu.dimension_semantics<parallel>], iteration_bounds = array<i64: 1>, scalar_prefetch = 0 : i64, scratch_operands = 1 : i64, tpu.core_type = #tpu.core_type<tc>, window_params = [{transform_indices = @transform_0, window_bounds = array<i64: 16, 8, 32>}, {pipeline_mode = #tpu.pipeline_mode<synchronous>, transform_indices = @transform_1, window_bounds = array<i64: 48, 128>}, {transform_indices = @transform_2, window_bounds = array<i64: 16, 8, 32>}]} {
    %c0 = arith.constant 0 : index
    %c0_0 = arith.constant 0 : index
    %0 = vector.load %arg2[%c0, %c0_0] : memref<48x128xf32, #tpu.memory_space<vmem>>, vector<48x128xf32>
    %1 = vector.extract_strided_slice %0 {offsets = [0, 0], sizes = [32, 16], strides = [1, 1]} : vector<48x128xf32> to vector<32x16xf32>
    %2 = vector.extract_strided_slice %0 {offsets = [32, 0], sizes = [8, 32], strides = [1, 1]} : vector<48x128xf32> to vector<8x32xf32>
    %3 = vector.extract_strided_slice %0 {offsets = [32, 32], sizes = [8, 32], strides = [1, 1]} : vector<48x128xf32> to vector<8x32xf32>
    %4 = vector.extract_strided_slice %0 {offsets = [40, 0], sizes = [8, 96], strides = [1, 1]} : vector<48x128xf32> to vector<8x96xf32>
    %5 = vector.extract_strided_slice %0 {offsets = [40, 96], sizes = [1, 8], strides = [1, 1]} : vector<48x128xf32> to vector<1x8xf32>
    %6 = vector.shape_cast %5 : vector<1x8xf32> to vector<1x1x8xf32>
    %7 = vector.extract_strided_slice %0 {offsets = [41, 96], sizes = [1, 32], strides = [1, 1]} : vector<48x128xf32> to vector<1x32xf32>
    %8 = vector.extract_strided_slice %0 {offsets = [42, 96], sizes = [1, 32], strides = [1, 1]} : vector<48x128xf32> to vector<1x32xf32>
    %9 = vector.shape_cast %8 : vector<1x32xf32> to vector<1x1x32xf32>
    %c0_1 = arith.constant 0 : index
    %c0_2 = arith.constant 0 : index
    %c0_3 = arith.constant 0 : index
    %10 = vector.load %arg1[%c0_1, %c0_2, %c0_3] : memref<16x8x32xf32, #tpu.memory_space<vmem>>, vector<16x8x32xf32>
    %11 = vector.shape_cast %10 : vector<16x8x32xf32> to vector<128x32xf32>
    %cst = arith.constant dense<0.000000e+00> : vector<128x16xf32>
    %12 = tpu.matmul %11, %1, %cst {dimension_numbers = #tpu.dot_dimension_numbers<[1], [0], [0], [1], [0, 0, 1, 1], [], []>} : vector<128x32xf32>, vector<32x16xf32>, vector<128x16xf32> -> vector<128x16xf32>
    %13 = vector.shape_cast %12 : vector<128x16xf32> to vector<16x8x16xf32>
    %14 = vector.extract_strided_slice %13 {offsets = [0, 0, 0], sizes = [16, 8, 8], strides = [1, 1, 1]} : vector<16x8x16xf32> to vector<16x8x8xf32>
    %15 = vector.extract_strided_slice %13 {offsets = [0, 0, 8], sizes = [16, 8, 8], strides = [1, 1, 1]} : vector<16x8x16xf32> to vector<16x8x8xf32>
    %16 = vector.extract_strided_slice %15 {offsets = [0, 0, 0], sizes = [1, 8, 8], strides = [1, 1, 1]} : vector<16x8x8xf32> to vector<1x8x8xf32>
    %17 = vector.extract_strided_slice %14 {offsets = [0, 0, 0], sizes = [15, 8, 8], strides = [1, 1, 1]} : vector<16x8x8xf32> to vector<15x8x8xf32>
    %18 = vector.extract_strided_slice %15 {offsets = [1, 0, 0], sizes = [15, 8, 8], strides = [1, 1, 1]} : vector<16x8x8xf32> to vector<15x8x8xf32>
    %19 = arith.addf %17, %18 : vector<15x8x8xf32>
    %20 = vector.extract_strided_slice %14 {offsets = [15, 0, 0], sizes = [1, 8, 8], strides = [1, 1, 1]} : vector<16x8x8xf32> to vector<1x8x8xf32>
    %21 = tpu.concatenate %16, %19, %20 in 0 : vector<1x8x8xf32>, vector<15x8x8xf32>, vector<1x8x8xf32> -> vector<17x8x8xf32>
    %22 = vector.extract_strided_slice %21 {offsets = [0, 0, 0], sizes = [16, 8, 8], strides = [1, 1, 1]} : vector<17x8x8xf32> to vector<16x8x8xf32>
    %23 = vector.shape_cast %22 : vector<16x8x8xf32> to vector<8x2x8x8xf32>
    %24 = vector.extract_strided_slice %23 {offsets = [0, 0, 0, 0], sizes = [8, 1, 8, 8], strides = [1, 1, 1, 1]} : vector<8x2x8x8xf32> to vector<8x1x8x8xf32>
    %25 = vector.shape_cast %24 : vector<8x1x8x8xf32> to vector<8x8x8xf32>
    %26 = vector.extract_strided_slice %23 {offsets = [0, 1, 0, 0], sizes = [8, 1, 8, 8], strides = [1, 1, 1, 1]} : vector<8x2x8x8xf32> to vector<8x1x8x8xf32>
    %27 = vector.shape_cast %26 : vector<8x1x8x8xf32> to vector<8x8x8xf32>
    %28 = arith.maximumf %25, %27 : vector<8x8x8xf32>
    %29 = vector.broadcast %6 : vector<1x1x8xf32> to vector<8x8x8xf32>
    %30 = arith.addf %28, %29 : vector<8x8x8xf32>
    %cst_4 = arith.constant 0.000000e+00 : f32
    %31 = vector.broadcast %cst_4 : f32 to vector<8x8x8xf32>
    %32 = arith.maximumf %30, %31 : vector<8x8x8xf32>
    %33 = vector.shape_cast %32 : vector<8x8x8xf32> to vector<64x8xf32>
    %cst_5 = arith.constant dense<0.000000e+00> : vector<64x32xf32>
    %34 = tpu.matmul %33, %2, %cst_5 {dimension_numbers = #tpu.dot_dimension_numbers<[1], [0], [0], [1], [0, 0, 1, 1], [], []>} : vector<64x8xf32>, vector<8x32xf32>, vector<64x32xf32> -> vector<64x32xf32>
    %35 = vector.broadcast %7 : vector<1x32xf32> to vector<64x32xf32>
    %36 = arith.addf %34, %35 : vector<64x32xf32>
    %37 = vector.shape_cast %36 : vector<64x32xf32> to vector<8x8x32xf32>
    %cst_6 = arith.constant 0.000000e+00 : f32
    %38 = vector.broadcast %cst_6 : f32 to vector<8x8xf32>
    %cst_7 = arith.constant 0.000000e+00 : f32
    %39 = vector.broadcast %cst_7 : f32 to vector<8x8xf32>
    %40 = vector.extract_strided_slice %37 {offsets = [0, 0, 0], sizes = [1, 8, 32], strides = [1, 1, 1]} : vector<8x8x32xf32> to vector<1x8x32xf32>
    %41 = vector.shape_cast %40 : vector<1x8x32xf32> to vector<8x32xf32>
    %cst_8 = arith.constant dense<0.000000e+00> : vector<8x32xf32>
    %42 = tpu.matmul %38, %3, %cst_8 {dimension_numbers = #tpu.dot_dimension_numbers<[1], [0], [0], [1], [0, 0, 1, 1], [], []>} : vector<8x8xf32>, vector<8x32xf32>, vector<8x32xf32> -> vector<8x32xf32>
    %43 = arith.addf %41, %42 : vector<8x32xf32>
    %44 = arith.negf %43 : vector<8x32xf32>
    %45 = math.exp %44 : vector<8x32xf32>
    %cst_9 = arith.constant 1.000000e+00 : f32
    %46 = vector.broadcast %cst_9 : f32 to vector<8x32xf32>
    %47 = arith.addf %46, %45 : vector<8x32xf32>
    %48 = arith.divf %46, %47 : vector<8x32xf32>
    %49 = vector.extract_strided_slice %43 {offsets = [0, 16], sizes = [8, 8], strides = [1, 1]} : vector<8x32xf32> to vector<8x8xf32>
    %50 = math.tanh %49 : vector<8x8xf32>
    %51 = vector.extract_strided_slice %48 {offsets = [0, 8], sizes = [8, 8], strides = [1, 1]} : vector<8x32xf32> to vector<8x8xf32>
    %52 = arith.mulf %51, %39 : vector<8x8xf32>
    %53 = vector.extract_strided_slice %48 {offsets = [0, 0], sizes = [8, 8], strides = [1, 1]} : vector<8x32xf32> to vector<8x8xf32>
    %54 = arith.mulf %53, %50 : vector<8x8xf32>
    %55 = arith.addf %52, %54 : vector<8x8xf32>
    %56 = vector.extract_strided_slice %48 {offsets = [0, 24], sizes = [8, 8], strides = [1, 1]} : vector<8x32xf32> to vector<8x8xf32>
    %57 = math.tanh %55 : vector<8x8xf32>
    %58 = arith.mulf %56, %57 : vector<8x8xf32>
    %c0_10 = arith.constant 0 : index
    %c0_11 = arith.constant 0 : index
    %c0_12 = arith.constant 0 : index
    %59 = vector.load %arg4[%c0_10, %c0_11, %c0_12] : memref<8x8x8xf32, #tpu.memory_space<vmem>>, vector<1x8x8xf32>
    %60 = vector.shape_cast %59 : vector<1x8x8xf32> to vector<8x8xf32>
    %61 = vector.shape_cast %58 : vector<8x8xf32> to vector<1x8x8xf32>
    tpu.vector_store %arg4[%c0_10, %c0_11, %c0_12], %61 {strides = array<i32>} : memref<8x8x8xf32, #tpu.memory_space<vmem>>, vector<1x8x8xf32>,
    %62 = vector.extract_strided_slice %37 {offsets = [1, 0, 0], sizes = [1, 8, 32], strides = [1, 1, 1]} : vector<8x8x32xf32> to vector<1x8x32xf32>
    %63 = vector.shape_cast %62 : vector<1x8x32xf32> to vector<8x32xf32>
    %cst_13 = arith.constant dense<0.000000e+00> : vector<8x32xf32>
    %64 = tpu.matmul %58, %3, %cst_13 {dimension_numbers = #tpu.dot_dimension_numbers<[1], [0], [0], [1], [0, 0, 1, 1], [], []>} : vector<8x8xf32>, vector<8x32xf32>, vector<8x32xf32> -> vector<8x32xf32>
    %65 = arith.addf %63, %64 : vector<8x32xf32>
    %66 = arith.negf %65 : vector<8x32xf32>
    %67 = math.exp %66 : vector<8x32xf32>
    %cst_14 = arith.constant 1.000000e+00 : f32
    %68 = vector.broadcast %cst_14 : f32 to vector<8x32xf32>
    %69 = arith.addf %68, %67 : vector<8x32xf32>
    %70 = arith.divf %68, %69 : vector<8x32xf32>
    %71 = vector.extract_strided_slice %65 {offsets = [0, 16], sizes = [8, 8], strides = [1, 1]} : vector<8x32xf32> to vector<8x8xf32>
    %72 = math.tanh %71 : vector<8x8xf32>
    %73 = vector.extract_strided_slice %70 {offsets = [0, 8], sizes = [8, 8], strides = [1, 1]} : vector<8x32xf32> to vector<8x8xf32>
    %74 = arith.mulf %73, %55 : vector<8x8xf32>
    %75 = vector.extract_strided_slice %70 {offsets = [0, 0], sizes = [8, 8], strides = [1, 1]} : vector<8x32xf32> to vector<8x8xf32>
    %76 = arith.mulf %75, %72 : vector<8x8xf32>
    %77 = arith.addf %74, %76 : vector<8x8xf32>
    %78 = vector.extract_strided_slice %70 {offsets = [0, 24], sizes = [8, 8], strides = [1, 1]} : vector<8x32xf32> to vector<8x8xf32>
    %79 = math.tanh %77 : vector<8x8xf32>
    %80 = arith.mulf %78, %79 : vector<8x8xf32>
    %c1 = arith.constant 1 : index
    %c0_15 = arith.constant 0 : index
    %c0_16 = arith.constant 0 : index
    %81 = vector.load %arg4[%c1, %c0_15, %c0_16] : memref<8x8x8xf32, #tpu.memory_space<vmem>>, vector<1x8x8xf32>
    %82 = vector.shape_cast %81 : vector<1x8x8xf32> to vector<8x8xf32>
    %83 = vector.shape_cast %80 : vector<8x8xf32> to vector<1x8x8xf32>
    tpu.vector_store %arg4[%c1, %c0_15, %c0_16], %83 {strides = array<i32>} : memref<8x8x8xf32, #tpu.memory_space<vmem>>, vector<1x8x8xf32>,
    %84 = vector.extract_strided_slice %37 {offsets = [2, 0, 0], sizes = [1, 8, 32], strides = [1, 1, 1]} : vector<8x8x32xf32> to vector<1x8x32xf32>
    %85 = vector.shape_cast %84 : vector<1x8x32xf32> to vector<8x32xf32>
    %cst_17 = arith.constant dense<0.000000e+00> : vector<8x32xf32>
    %86 = tpu.matmul %80, %3, %cst_17 {dimension_numbers = #tpu.dot_dimension_numbers<[1], [0], [0], [1], [0, 0, 1, 1], [], []>} : vector<8x8xf32>, vector<8x32xf32>, vector<8x32xf32> -> vector<8x32xf32>
    %87 = arith.addf %85, %86 : vector<8x32xf32>
    %88 = arith.negf %87 : vector<8x32xf32>
    %89 = math.exp %88 : vector<8x32xf32>
    %cst_18 = arith.constant 1.000000e+00 : f32
    %90 = vector.broadcast %cst_18 : f32 to vector<8x32xf32>
    %91 = arith.addf %90, %89 : vector<8x32xf32>
    %92 = arith.divf %90, %91 : vector<8x32xf32>
    %93 = vector.extract_strided_slice %87 {offsets = [0, 16], sizes = [8, 8], strides = [1, 1]} : vector<8x32xf32> to vector<8x8xf32>
    %94 = math.tanh %93 : vector<8x8xf32>
    %95 = vector.extract_strided_slice %92 {offsets = [0, 8], sizes = [8, 8], strides = [1, 1]} : vector<8x32xf32> to vector<8x8xf32>
    %96 = arith.mulf %95, %77 : vector<8x8xf32>
    %97 = vector.extract_strided_slice %92 {offsets = [0, 0], sizes = [8, 8], strides = [1, 1]} : vector<8x32xf32> to vector<8x8xf32>
    %98 = arith.mulf %97, %94 : vector<8x8xf32>
    %99 = arith.addf %96, %98 : vector<8x8xf32>
    %100 = vector.extract_strided_slice %92 {offsets = [0, 24], sizes = [8, 8], strides = [1, 1]} : vector<8x32xf32> to vector<8x8xf32>
    %101 = math.tanh %99 : vector<8x8xf32>
    %102 = arith.mulf %100, %101 : vector<8x8xf32>
    %c2 = arith.constant 2 : index
    %c0_19 = arith.constant 0 : index
    %c0_20 = arith.constant 0 : index
    %103 = vector.load %arg4[%c2, %c0_19, %c0_20] : memref<8x8x8xf32, #tpu.memory_space<vmem>>, vector<1x8x8xf32>
    %104 = vector.shape_cast %103 : vector<1x8x8xf32> to vector<8x8xf32>
    %105 = vector.shape_cast %102 : vector<8x8xf32> to vector<1x8x8xf32>
    tpu.vector_store %arg4[%c2, %c0_19, %c0_20], %105 {strides = array<i32>} : memref<8x8x8xf32, #tpu.memory_space<vmem>>, vector<1x8x8xf32>,
    %106 = vector.extract_strided_slice %37 {offsets = [3, 0, 0], sizes = [1, 8, 32], strides = [1, 1, 1]} : vector<8x8x32xf32> to vector<1x8x32xf32>
    %107 = vector.shape_cast %106 : vector<1x8x32xf32> to vector<8x32xf32>
    %cst_21 = arith.constant dense<0.000000e+00> : vector<8x32xf32>
    %108 = tpu.matmul %102, %3, %cst_21 {dimension_numbers = #tpu.dot_dimension_numbers<[1], [0], [0], [1], [0, 0, 1, 1], [], []>} : vector<8x8xf32>, vector<8x32xf32>, vector<8x32xf32> -> vector<8x32xf32>
    %109 = arith.addf %107, %108 : vector<8x32xf32>
    %110 = arith.negf %109 : vector<8x32xf32>
    %111 = math.exp %110 : vector<8x32xf32>
    %cst_22 = arith.constant 1.000000e+00 : f32
    %112 = vector.broadcast %cst_22 : f32 to vector<8x32xf32>
    %113 = arith.addf %112, %111 : vector<8x32xf32>
    %114 = arith.divf %112, %113 : vector<8x32xf32>
    %115 = vector.extract_strided_slice %109 {offsets = [0, 16], sizes = [8, 8], strides = [1, 1]} : vector<8x32xf32> to vector<8x8xf32>
    %116 = math.tanh %115 : vector<8x8xf32>
    %117 = vector.extract_strided_slice %114 {offsets = [0, 8], sizes = [8, 8], strides = [1, 1]} : vector<8x32xf32> to vector<8x8xf32>
    %118 = arith.mulf %117, %99 : vector<8x8xf32>
    %119 = vector.extract_strided_slice %114 {offsets = [0, 0], sizes = [8, 8], strides = [1, 1]} : vector<8x32xf32> to vector<8x8xf32>
    %120 = arith.mulf %119, %116 : vector<8x8xf32>
    %121 = arith.addf %118, %120 : vector<8x8xf32>
    %122 = vector.extract_strided_slice %114 {offsets = [0, 24], sizes = [8, 8], strides = [1, 1]} : vector<8x32xf32> to vector<8x8xf32>
    %123 = math.tanh %121 : vector<8x8xf32>
    %124 = arith.mulf %122, %123 : vector<8x8xf32>
    %c3 = arith.constant 3 : index
    %c0_23 = arith.constant 0 : index
    %c0_24 = arith.constant 0 : index
    %125 = vector.load %arg4[%c3, %c0_23, %c0_24] : memref<8x8x8xf32, #tpu.memory_space<vmem>>, vector<1x8x8xf32>
    %126 = vector.shape_cast %125 : vector<1x8x8xf32> to vector<8x8xf32>
    %127 = vector.shape_cast %124 : vector<8x8xf32> to vector<1x8x8xf32>
    tpu.vector_store %arg4[%c3, %c0_23, %c0_24], %127 {strides = array<i32>} : memref<8x8x8xf32, #tpu.memory_space<vmem>>, vector<1x8x8xf32>,
    %128 = vector.extract_strided_slice %37 {offsets = [4, 0, 0], sizes = [1, 8, 32], strides = [1, 1, 1]} : vector<8x8x32xf32> to vector<1x8x32xf32>
    %129 = vector.shape_cast %128 : vector<1x8x32xf32> to vector<8x32xf32>
    %cst_25 = arith.constant dense<0.000000e+00> : vector<8x32xf32>
    %130 = tpu.matmul %124, %3, %cst_25 {dimension_numbers = #tpu.dot_dimension_numbers<[1], [0], [0], [1], [0, 0, 1, 1], [], []>} : vector<8x8xf32>, vector<8x32xf32>, vector<8x32xf32> -> vector<8x32xf32>
    %131 = arith.addf %129, %130 : vector<8x32xf32>
    %132 = arith.negf %131 : vector<8x32xf32>
    %133 = math.exp %132 : vector<8x32xf32>
    %cst_26 = arith.constant 1.000000e+00 : f32
    %134 = vector.broadcast %cst_26 : f32 to vector<8x32xf32>
    %135 = arith.addf %134, %133 : vector<8x32xf32>
    %136 = arith.divf %134, %135 : vector<8x32xf32>
    %137 = vector.extract_strided_slice %131 {offsets = [0, 16], sizes = [8, 8], strides = [1, 1]} : vector<8x32xf32> to vector<8x8xf32>
    %138 = math.tanh %137 : vector<8x8xf32>
    %139 = vector.extract_strided_slice %136 {offsets = [0, 8], sizes = [8, 8], strides = [1, 1]} : vector<8x32xf32> to vector<8x8xf32>
    %140 = arith.mulf %139, %121 : vector<8x8xf32>
    %141 = vector.extract_strided_slice %136 {offsets = [0, 0], sizes = [8, 8], strides = [1, 1]} : vector<8x32xf32> to vector<8x8xf32>
    %142 = arith.mulf %141, %138 : vector<8x8xf32>
    %143 = arith.addf %140, %142 : vector<8x8xf32>
    %144 = vector.extract_strided_slice %136 {offsets = [0, 24], sizes = [8, 8], strides = [1, 1]} : vector<8x32xf32> to vector<8x8xf32>
    %145 = math.tanh %143 : vector<8x8xf32>
    %146 = arith.mulf %144, %145 : vector<8x8xf32>
    %c4 = arith.constant 4 : index
    %c0_27 = arith.constant 0 : index
    %c0_28 = arith.constant 0 : index
    %147 = vector.load %arg4[%c4, %c0_27, %c0_28] : memref<8x8x8xf32, #tpu.memory_space<vmem>>, vector<1x8x8xf32>
    %148 = vector.shape_cast %147 : vector<1x8x8xf32> to vector<8x8xf32>
    %149 = vector.shape_cast %146 : vector<8x8xf32> to vector<1x8x8xf32>
    tpu.vector_store %arg4[%c4, %c0_27, %c0_28], %149 {strides = array<i32>} : memref<8x8x8xf32, #tpu.memory_space<vmem>>, vector<1x8x8xf32>,
    %150 = vector.extract_strided_slice %37 {offsets = [5, 0, 0], sizes = [1, 8, 32], strides = [1, 1, 1]} : vector<8x8x32xf32> to vector<1x8x32xf32>
    %151 = vector.shape_cast %150 : vector<1x8x32xf32> to vector<8x32xf32>
    %cst_29 = arith.constant dense<0.000000e+00> : vector<8x32xf32>
    %152 = tpu.matmul %146, %3, %cst_29 {dimension_numbers = #tpu.dot_dimension_numbers<[1], [0], [0], [1], [0, 0, 1, 1], [], []>} : vector<8x8xf32>, vector<8x32xf32>, vector<8x32xf32> -> vector<8x32xf32>
    %153 = arith.addf %151, %152 : vector<8x32xf32>
    %154 = arith.negf %153 : vector<8x32xf32>
    %155 = math.exp %154 : vector<8x32xf32>
    %cst_30 = arith.constant 1.000000e+00 : f32
    %156 = vector.broadcast %cst_30 : f32 to vector<8x32xf32>
    %157 = arith.addf %156, %155 : vector<8x32xf32>
    %158 = arith.divf %156, %157 : vector<8x32xf32>
    %159 = vector.extract_strided_slice %153 {offsets = [0, 16], sizes = [8, 8], strides = [1, 1]} : vector<8x32xf32> to vector<8x8xf32>
    %160 = math.tanh %159 : vector<8x8xf32>
    %161 = vector.extract_strided_slice %158 {offsets = [0, 8], sizes = [8, 8], strides = [1, 1]} : vector<8x32xf32> to vector<8x8xf32>
    %162 = arith.mulf %161, %143 : vector<8x8xf32>
    %163 = vector.extract_strided_slice %158 {offsets = [0, 0], sizes = [8, 8], strides = [1, 1]} : vector<8x32xf32> to vector<8x8xf32>
    %164 = arith.mulf %163, %160 : vector<8x8xf32>
    %165 = arith.addf %162, %164 : vector<8x8xf32>
    %166 = vector.extract_strided_slice %158 {offsets = [0, 24], sizes = [8, 8], strides = [1, 1]} : vector<8x32xf32> to vector<8x8xf32>
    %167 = math.tanh %165 : vector<8x8xf32>
    %168 = arith.mulf %166, %167 : vector<8x8xf32>
    %c5 = arith.constant 5 : index
    %c0_31 = arith.constant 0 : index
    %c0_32 = arith.constant 0 : index
    %169 = vector.load %arg4[%c5, %c0_31, %c0_32] : memref<8x8x8xf32, #tpu.memory_space<vmem>>, vector<1x8x8xf32>
    %170 = vector.shape_cast %169 : vector<1x8x8xf32> to vector<8x8xf32>
    %171 = vector.shape_cast %168 : vector<8x8xf32> to vector<1x8x8xf32>
    tpu.vector_store %arg4[%c5, %c0_31, %c0_32], %171 {strides = array<i32>} : memref<8x8x8xf32, #tpu.memory_space<vmem>>, vector<1x8x8xf32>,
    %172 = vector.extract_strided_slice %37 {offsets = [6, 0, 0], sizes = [1, 8, 32], strides = [1, 1, 1]} : vector<8x8x32xf32> to vector<1x8x32xf32>
    %173 = vector.shape_cast %172 : vector<1x8x32xf32> to vector<8x32xf32>
    %cst_33 = arith.constant dense<0.000000e+00> : vector<8x32xf32>
    %174 = tpu.matmul %168, %3, %cst_33 {dimension_numbers = #tpu.dot_dimension_numbers<[1], [0], [0], [1], [0, 0, 1, 1], [], []>} : vector<8x8xf32>, vector<8x32xf32>, vector<8x32xf32> -> vector<8x32xf32>
    %175 = arith.addf %173, %174 : vector<8x32xf32>
    %176 = arith.negf %175 : vector<8x32xf32>
    %177 = math.exp %176 : vector<8x32xf32>
    %cst_34 = arith.constant 1.000000e+00 : f32
    %178 = vector.broadcast %cst_34 : f32 to vector<8x32xf32>
    %179 = arith.addf %178, %177 : vector<8x32xf32>
    %180 = arith.divf %178, %179 : vector<8x32xf32>
    %181 = vector.extract_strided_slice %175 {offsets = [0, 16], sizes = [8, 8], strides = [1, 1]} : vector<8x32xf32> to vector<8x8xf32>
    %182 = math.tanh %181 : vector<8x8xf32>
    %183 = vector.extract_strided_slice %180 {offsets = [0, 8], sizes = [8, 8], strides = [1, 1]} : vector<8x32xf32> to vector<8x8xf32>
    %184 = arith.mulf %183, %165 : vector<8x8xf32>
    %185 = vector.extract_strided_slice %180 {offsets = [0, 0], sizes = [8, 8], strides = [1, 1]} : vector<8x32xf32> to vector<8x8xf32>
    %186 = arith.mulf %185, %182 : vector<8x8xf32>
    %187 = arith.addf %184, %186 : vector<8x8xf32>
    %188 = vector.extract_strided_slice %180 {offsets = [0, 24], sizes = [8, 8], strides = [1, 1]} : vector<8x32xf32> to vector<8x8xf32>
    %189 = math.tanh %187 : vector<8x8xf32>
    %190 = arith.mulf %188, %189 : vector<8x8xf32>
    %c6 = arith.constant 6 : index
    %c0_35 = arith.constant 0 : index
    %c0_36 = arith.constant 0 : index
    %191 = vector.load %arg4[%c6, %c0_35, %c0_36] : memref<8x8x8xf32, #tpu.memory_space<vmem>>, vector<1x8x8xf32>
    %192 = vector.shape_cast %191 : vector<1x8x8xf32> to vector<8x8xf32>
    %193 = vector.shape_cast %190 : vector<8x8xf32> to vector<1x8x8xf32>
    tpu.vector_store %arg4[%c6, %c0_35, %c0_36], %193 {strides = array<i32>} : memref<8x8x8xf32, #tpu.memory_space<vmem>>, vector<1x8x8xf32>,
    %194 = vector.extract_strided_slice %37 {offsets = [7, 0, 0], sizes = [1, 8, 32], strides = [1, 1, 1]} : vector<8x8x32xf32> to vector<1x8x32xf32>
    %195 = vector.shape_cast %194 : vector<1x8x32xf32> to vector<8x32xf32>
    %cst_37 = arith.constant dense<0.000000e+00> : vector<8x32xf32>
    %196 = tpu.matmul %190, %3, %cst_37 {dimension_numbers = #tpu.dot_dimension_numbers<[1], [0], [0], [1], [0, 0, 1, 1], [], []>} : vector<8x8xf32>, vector<8x32xf32>, vector<8x32xf32> -> vector<8x32xf32>
    %197 = arith.addf %195, %196 : vector<8x32xf32>
    %198 = arith.negf %197 : vector<8x32xf32>
    %199 = math.exp %198 : vector<8x32xf32>
    %cst_38 = arith.constant 1.000000e+00 : f32
    %200 = vector.broadcast %cst_38 : f32 to vector<8x32xf32>
    %201 = arith.addf %200, %199 : vector<8x32xf32>
    %202 = arith.divf %200, %201 : vector<8x32xf32>
    %203 = vector.extract_strided_slice %197 {offsets = [0, 16], sizes = [8, 8], strides = [1, 1]} : vector<8x32xf32> to vector<8x8xf32>
    %204 = math.tanh %203 : vector<8x8xf32>
    %205 = vector.extract_strided_slice %202 {offsets = [0, 8], sizes = [8, 8], strides = [1, 1]} : vector<8x32xf32> to vector<8x8xf32>
    %206 = arith.mulf %205, %187 : vector<8x8xf32>
    %207 = vector.extract_strided_slice %202 {offsets = [0, 0], sizes = [8, 8], strides = [1, 1]} : vector<8x32xf32> to vector<8x8xf32>
    %208 = arith.mulf %207, %204 : vector<8x8xf32>
    %209 = arith.addf %206, %208 : vector<8x8xf32>
    %210 = vector.extract_strided_slice %202 {offsets = [0, 24], sizes = [8, 8], strides = [1, 1]} : vector<8x32xf32> to vector<8x8xf32>
    %211 = math.tanh %209 : vector<8x8xf32>
    %212 = arith.mulf %210, %211 : vector<8x8xf32>
    %c7 = arith.constant 7 : index
    %c0_39 = arith.constant 0 : index
    %c0_40 = arith.constant 0 : index
    %213 = vector.load %arg4[%c7, %c0_39, %c0_40] : memref<8x8x8xf32, #tpu.memory_space<vmem>>, vector<1x8x8xf32>
    %214 = vector.shape_cast %213 : vector<1x8x8xf32> to vector<8x8xf32>
    %215 = vector.shape_cast %212 : vector<8x8xf32> to vector<1x8x8xf32>
    tpu.vector_store %arg4[%c7, %c0_39, %c0_40], %215 {strides = array<i32>} : memref<8x8x8xf32, #tpu.memory_space<vmem>>, vector<1x8x8xf32>,
    %c0_41 = arith.constant 0 : index
    %c0_42 = arith.constant 0 : index
    %c0_43 = arith.constant 0 : index
    %216 = vector.load %arg4[%c0_41, %c0_42, %c0_43] : memref<8x8x8xf32, #tpu.memory_space<vmem>>, vector<8x8x8xf32>
    %217 = vector.shape_cast %216 : vector<8x8x8xf32> to vector<64x8xf32>
    %cst_44 = arith.constant dense<0.000000e+00> : vector<64x96xf32>
    %218 = tpu.matmul %217, %4, %cst_44 {dimension_numbers = #tpu.dot_dimension_numbers<[1], [0], [0], [1], [0, 0, 1, 1], [], []>} : vector<64x8xf32>, vector<8x96xf32>, vector<64x96xf32> -> vector<64x96xf32>
    %219 = vector.shape_cast %218 : vector<64x96xf32> to vector<8x8x96xf32>
    %220 = vector.extract_strided_slice %219 {offsets = [0, 0, 0], sizes = [8, 8, 32], strides = [1, 1, 1]} : vector<8x8x96xf32> to vector<8x8x32xf32>
    %221 = vector.extract_strided_slice %219 {offsets = [0, 0, 32], sizes = [8, 8, 32], strides = [1, 1, 1]} : vector<8x8x96xf32> to vector<8x8x32xf32>
    %222 = vector.extract_strided_slice %219 {offsets = [1, 0, 64], sizes = [7, 8, 32], strides = [1, 1, 1]} : vector<8x8x96xf32> to vector<7x8x32xf32>
    %cst_45 = arith.constant 0.000000e+00 : f32
    %223 = vector.broadcast %cst_45 : f32 to vector<1x8x32xf32>
    %224 = tpu.concatenate %222, %223 in 0 : vector<7x8x32xf32>, vector<1x8x32xf32> -> vector<8x8x32xf32>
    %225 = arith.addf %221, %224 : vector<8x8x32xf32>
    %226 = vector.shape_cast %220 : vector<8x8x32xf32> to vector<8x1x8x32xf32>
    %227 = vector.shape_cast %225 : vector<8x8x32xf32> to vector<8x1x8x32xf32>
    %228 = tpu.concatenate %226, %227 in 1 : vector<8x1x8x32xf32>, vector<8x1x8x32xf32> -> vector<8x2x8x32xf32>
    %229 = vector.shape_cast %228 : vector<8x2x8x32xf32> to vector<16x8x32xf32>
    %230 = vector.broadcast %9 : vector<1x1x32xf32> to vector<16x8x32xf32>
    %231 = arith.addf %229, %230 : vector<16x8x32xf32>
    %cst_46 = arith.constant 0.000000e+00 : f32
    %232 = vector.broadcast %cst_46 : f32 to vector<16x8x32xf32>
    %233 = arith.maximumf %231, %232 : vector<16x8x32xf32>
    %c0_47 = arith.constant 0 : index
    %c0_48 = arith.constant 0 : index
    %c0_49 = arith.constant 0 : index
    %234 = vector.load %arg3[%c0_47, %c0_48, %c0_49] : memref<16x8x32xf32, #tpu.memory_space<vmem>>, vector<16x8x32xf32>
    tpu.vector_store %arg3[%c0_47, %c0_48, %c0_49], %233 {strides = array<i32>} : memref<16x8x32xf32, #tpu.memory_space<vmem>>, vector<16x8x32xf32>,
    return
  }
  func.func @transform_0(%arg0: i32) -> (i32, i32, i32) {
    %c0_i32 = arith.constant 0 : i32
    %c0_i32_0 = arith.constant 0 : i32
    %c0_i32_1 = arith.constant 0 : i32
    return %c0_i32, %arg0, %c0_i32_0 : i32, i32, i32
  }
  func.func @transform_1(%arg0: i32) -> (i32, i32) {
    %c0_i32 = arith.constant 0 : i32
    %c0_i32_0 = arith.constant 0 : i32
    %c0_i32_1 = arith.constant 0 : i32
    return %c0_i32, %c0_i32_0 : i32, i32
  }
  func.func @transform_2(%arg0: i32) -> (i32, i32, i32) {
    %c0_i32 = arith.constant 0 : i32
    %c0_i32_0 = arith.constant 0 : i32
    %c0_i32_1 = arith.constant 0 : i32
    return %c0_i32, %arg0, %c0_i32_0 : i32, i32, i32
  }
}

</mosaic_0001>

<llo_original>
// kernel: tpu_custom_call.1
$region0: #{tpu_custom_call.1}
  #allocation0 [shape = 'u32[]', space=smem, size = 0x4, offset = 0x4, fixed_abs, tag = 'smem constant byte address 0x4 - core index']
  #allocation1 [shape = 'u32[72,128]{1,0:T(1,128)}', space=vmem, size = 0x9000, scoped, tag = 'internal scratch']
  #allocation2 [shape = 'f32[8,8,8]{2,1,0:T(8,128)}', space=vmem, size = 0x8000, scoped, tag = 'scratch operand']
  %s0 = inlined_call_operand.hbm [shape: f32[16,8,32], index: 0, kind: input, shape index: {}]
  %s1 = inlined_call_operand.hbm [shape: f32[48,128], index: 1, kind: input, shape index: {}]
  %s2 = inlined_call_operand.hbm [shape: f32[16,8,32], index: 2, kind: output, shape index: {}]
  %s3 = sld [smem:[#allocation0]]
  $region26: #{tpu_custom_call.1} parent=0
    _
  %s5 = ssub.s32 1, %s3
  %s6 = scalar_select 0, %s5, %s3
  $region1: #{tpu_custom_call.1} parent=0
    #allocation3 [shape = 'u8[65536]{0}', space=vmem, size = 0x10000, scoped, tag = 'input window, operand 0, single buffered']
    #allocation4 [shape = 's32[1]{0}', space=sflag, size = 0x4, scoped, tag = 'scoped memory for tpu_custom_call.1']
    #allocation5 [shape = 's32[1]{0}', space=sflag, size = 0x4, scoped, tag = 'scoped memory for tpu_custom_call.1']
    #allocation6 [shape = 'u8[24576]{0}', space=vmem, size = 0x6000, scoped, tag = 'input window, operand 1, single buffered']
    #allocation7 [shape = 's32[1]{0}', space=sflag, size = 0x4, scoped, tag = 'scoped memory for tpu_custom_call.1']
    #allocation8 [shape = 'u8[65536]{0}', space=vmem, size = 0x10000, scoped, tag = 'output window, operand 0, single buffered']
    %7 = vsyncpa [#allocation4], 0
    %8 = vsyncpa [#allocation7], 0
    %9 = vsyncpa [#allocation5], 0
    // Predicated region
    $region2: #{tpu_custom_call.1} parent=1 // pred_check
      _
    $region3: #{tpu_custom_call.1} parent=1 // pred_check_branch
      %11 = sbr.rel (0) target = $region5
    $region4: #{tpu_custom_call.1} parent=1 // pred_region
      %13 = vsyncadd [#allocation4], 0
      %s14 = sshll.u32 %s0, 4
      %s15 = int_to_ptr.hbm [resolvable:$true] %s14
      %s16 = sshll.u32 [#allocation3], 4
      %s17 = int_to_ptr.vmem [resolvable:$true] %s16
      %22 = dma.hbm_to_vmem [thread:$0]  %s15, 2048, %s17, [#allocation4], 128, 128, 8
    $region5: #{tpu_custom_call.1} parent=1 // pred_fallthru
      _
    // Predicated region
    $region6: #{tpu_custom_call.1} parent=1 // pred_check
      _
    $region7: #{tpu_custom_call.1} parent=1 // pred_check_branch
      %24 = sbr.rel (0) target = $region9
    $region8: #{tpu_custom_call.1} parent=1 // pred_region
      %26 = vsyncadd [#allocation7], 0
      %s27 = sshll.u32 %s1, 4
      %s28 = int_to_ptr.hbm [resolvable:$true] %s27
      %s29 = sshll.u32 [#allocation6], 4
      %s30 = int_to_ptr.vmem [resolvable:$true] %s29
      %35 = dma.hbm_to_vmem [thread:$0]  %s28, 768, %s30, [#allocation7], 128, 128, 8
    $region9: #{tpu_custom_call.1} parent=1 // pred_fallthru
      _
    // Predicated region
    $region10: #{tpu_custom_call.1} parent=1 // pred_check
      _
    $region11: #{tpu_custom_call.1} parent=1 // pred_check_branch
      %37 = sbr.rel (0) target = $region13
    $region12: #{tpu_custom_call.1} parent=1 // pred_region
      %39 = dma.done [#allocation4], 2048
    $region13: #{tpu_custom_call.1} parent=1 // pred_fallthru
      _
    // Predicated region
    $region14: #{tpu_custom_call.1} parent=1 // pred_check
      _
    $region15: #{tpu_custom_call.1} parent=1 // pred_check_branch
      %41 = sbr.rel (0) target = $region17
    $region16: #{tpu_custom_call.1} parent=1 // pred_region
      %43 = dma.done [#allocation7], 768
    $region17: #{tpu_custom_call.1} parent=1 // pred_fallthru
      _
    %v44 = vld [vmem:[#allocation6] sm:$0xff]
    %v45 = vld [vmem:[#allocation6 + $0x8] sm:$0xff]
    %v46 = vld [vmem:[#allocation6 + $0x10] sm:$0xff]
    %v47 = vld [vmem:[#allocation6 + $0x18] sm:$0xff]
    %v48 = vld [vmem:[#allocation6 + $0x20] sm:$0xff]
    %v49 = vld [vmem:[#allocation6 + $0x28] sm:$0xff]
    %v50 = vld [vmem:[#allocation3] sm:$0xff]
    %v51 = vld [vmem:[#allocation3 + $0x8] sm:$0xff]
    %v52 = vld [vmem:[#allocation3 + $0x10] sm:$0xff]
    %v53 = vld [vmem:[#allocation3 + $0x18] sm:$0xff]
    %v54 = vld [vmem:[#allocation3 + $0x20] sm:$0xff]
    %v55 = vld [vmem:[#allocation3 + $0x28] sm:$0xff]
    %v56 = vld [vmem:[#allocation3 + $0x30] sm:$0xff]
    %v57 = vld [vmem:[#allocation3 + $0x38] sm:$0xff]
    %v58 = vld [vmem:[#allocation3 + $0x40] sm:$0xff]
    %v59 = vld [vmem:[#allocation3 + $0x48] sm:$0xff]
    %v60 = vld [vmem:[#allocation3 + $0x50] sm:$0xff]
    %v61 = vld [vmem:[#allocation3 + $0x58] sm:$0xff]
    %v62 = vld [vmem:[#allocation3 + $0x60] sm:$0xff]
    %v63 = vld [vmem:[#allocation3 + $0x68] sm:$0xff]
    %v64 = vld [vmem:[#allocation3 + $0x70] sm:$0xff]
    %v65 = vld [vmem:[#allocation3 + $0x78] sm:$0xff]
    %vm66 = vcmask 261120
    %v68 = vsel %vm66, %v50, 0
    %v71 = vsel %vm66, %v51, 0
    %v74 = vsel %vm66, %v52, 0
    %v77 = vsel %vm66, %v53, 0
    %v80 = vsel %vm66, %v54, 0
    %v83 = vsel %vm66, %v55, 0
    %v86 = vsel %vm66, %v56, 0
    %v89 = vsel %vm66, %v57, 0
    %v92 = vsel %vm66, %v58, 0
    %v95 = vsel %vm66, %v59, 0
    %v98 = vsel %vm66, %v60, 0
    %v101 = vsel %vm66, %v61, 0
    %v104 = vsel %vm66, %v62, 0
    %v107 = vsel %vm66, %v63, 0
    %v110 = vsel %vm66, %v64, 0
    %v113 = vsel %vm66, %v65, 0
    %115 = vmatpush.msra.mxu0 0.0
    %116 = vmatpush.msra.mxu0 0.0
    %117 = vmatpush.msra.mxu0 0.0
    %118 = vmatpush.msra.mxu0 0.0
    %119 = vmatpush.msra.mxu0 0.0
    %120 = vmatpush.msra.mxu0 0.0
    %121 = vmatpush.msra.mxu0 0.0
    %122 = vmatpush.msra.mxu0 0.0
    %123 = vmatpush.msra.mxu0 0.0
    %124 = vmatpush.msra.mxu0 0.0
    %125 = vmatpush.msra.mxu0 0.0
    %126 = vmatpush.msra.mxu0 0.0
    %127 = vmatpush.msra.mxu0 %v47
    %128 = vmatpush.msra.mxu0 %v46
    %129 = vmatpush.msra.mxu0 %v45
    %130 = vmatpush.msra.mxu0 %v44
    %131 = vmatmul.f32.gmra.mxu0 %v68
    %v132 = vpop.f32.mrf.mxu0
    %v133 = vadd.f32 0.0, %v132
    %134 = vmatmul.f32.gmra.mxu0 %v71
    %v135 = vpop.f32.mrf.mxu0
    %v136 = vadd.f32 0.0, %v135
    %137 = vmatmul.f32.gmra.mxu0 %v74
    %v138 = vpop.f32.mrf.mxu0
    %v139 = vadd.f32 0.0, %v138
    %140 = vmatmul.f32.gmra.mxu0 %v77
    %v141 = vpop.f32.mrf.mxu0
    %v142 = vadd.f32 0.0, %v141
    %143 = vmatmul.f32.gmra.mxu0 %v80
    %v144 = vpop.f32.mrf.mxu0
    %v145 = vadd.f32 0.0, %v144
    %146 = vmatmul.f32.gmra.mxu0 %v83
    %v147 = vpop.f32.mrf.mxu0
    %v148 = vadd.f32 0.0, %v147
    %149 = vmatmul.f32.gmra.mxu0 %v86
    %v150 = vpop.f32.mrf.mxu0
    %v151 = vadd.f32 0.0, %v150
    %152 = vmatmul.f32.gmra.mxu0 %v89
    %v153 = vpop.f32.mrf.mxu0
    %v154 = vadd.f32 0.0, %v153
    %155 = vmatmul.f32.gmra.mxu0 %v92
    %v156 = vpop.f32.mrf.mxu0
    %v157 = vadd.f32 0.0, %v156
    %158 = vmatmul.f32.gmra.mxu0 %v95
    %v159 = vpop.f32.mrf.mxu0
    %v160 = vadd.f32 0.0, %v159
    %161 = vmatmul.f32.gmra.mxu0 %v98
    %v162 = vpop.f32.mrf.mxu0
    %v163 = vadd.f32 0.0, %v162
    %164 = vmatmul.f32.gmra.mxu0 %v101
    %v165 = vpop.f32.mrf.mxu0
    %v166 = vadd.f32 0.0, %v165
    %167 = vmatmul.f32.gmra.mxu0 %v104
    %v168 = vpop.f32.mrf.mxu0
    %v169 = vadd.f32 0.0, %v168
    %170 = vmatmul.f32.gmra.mxu0 %v107
    %v171 = vpop.f32.mrf.mxu0
    %v172 = vadd.f32 0.0, %v171
    %173 = vmatmul.f32.gmra.mxu0 %v110
    %v174 = vpop.f32.mrf.mxu0
    %v175 = vadd.f32 0.0, %v174
    %176 = vmatmul.f32.gmra.mxu0 %v113
    %v177 = vpop.f32.mrf.mxu0
    %v178 = vadd.f32 0.0, %v177
    %179 = vdwg.mxu0
    %195 = vrot.lane.b32.xlu0 %v136, 120
    %v196 = vpop.permute.xlu0 %195
    %197 = vrot.lane.b32.xlu0 %v139, 120
    %v198 = vpop.permute.xlu0 %197
    %199 = vrot.lane.b32.xlu0 %v142, 120
    %v200 = vpop.permute.xlu0 %199
    %201 = vrot.lane.b32.xlu0 %v145, 120
    %v202 = vpop.permute.xlu0 %201
    %203 = vrot.lane.b32.xlu0 %v148, 120
    %v204 = vpop.permute.xlu0 %203
    %205 = vrot.lane.b32.xlu0 %v151, 120
    %v206 = vpop.permute.xlu0 %205
    %207 = vrot.lane.b32.xlu0 %v154, 120
    %v208 = vpop.permute.xlu0 %207
    %209 = vrot.lane.b32.xlu0 %v157, 120
    %v210 = vpop.permute.xlu0 %209
    %211 = vrot.lane.b32.xlu0 %v160, 120
    %v212 = vpop.permute.xlu0 %211
    %213 = vrot.lane.b32.xlu0 %v163, 120
    %v214 = vpop.permute.xlu0 %213
    %215 = vrot.lane.b32.xlu0 %v166, 120
    %v216 = vpop.permute.xlu0 %215
    %217 = vrot.lane.b32.xlu0 %v169, 120
    %v218 = vpop.permute.xlu0 %217
    %219 = vrot.lane.b32.xlu0 %v172, 120
    %v220 = vpop.permute.xlu0 %219
    %221 = vrot.lane.b32.xlu0 %v175, 120
    %v222 = vpop.permute.xlu0 %221
    %223 = vrot.lane.b32.xlu0 %v178, 120
    %v224 = vpop.permute.xlu0 %223
    %v240 = vadd.f32 %v133, %v196
    %v241 = vadd.f32 %v136, %v198
    %v242 = vadd.f32 %v139, %v200
    %v243 = vadd.f32 %v142, %v202
    %v244 = vadd.f32 %v145, %v204
    %v245 = vadd.f32 %v148, %v206
    %v246 = vadd.f32 %v151, %v208
    %v247 = vadd.f32 %v154, %v210
    %v248 = vadd.f32 %v157, %v212
    %v249 = vadd.f32 %v160, %v214
    %v250 = vadd.f32 %v163, %v216
    %v251 = vadd.f32 %v166, %v218
    %v252 = vadd.f32 %v169, %v220
    %v253 = vadd.f32 %v172, %v222
    %v254 = vadd.f32 %v175, %v224
    %270 = vrot.lane.b32.xlu0 %v240, 8
    %v271 = vpop.permute.xlu0 %270
    %272 = vrot.lane.b32.xlu0 %v241, 8
    %v273 = vpop.permute.xlu0 %272
    %274 = vrot.lane.b32.xlu0 %v242, 8
    %v275 = vpop.permute.xlu0 %274
    %276 = vrot.lane.b32.xlu0 %v243, 8
    %v277 = vpop.permute.xlu0 %276
    %278 = vrot.lane.b32.xlu0 %v244, 8
    %v279 = vpop.permute.xlu0 %278
    %280 = vrot.lane.b32.xlu0 %v245, 8
    %v281 = vpop.permute.xlu0 %280
    %282 = vrot.lane.b32.xlu0 %v246, 8
    %v283 = vpop.permute.xlu0 %282
    %284 = vrot.lane.b32.xlu0 %v247, 8
    %v285 = vpop.permute.xlu0 %284
    %286 = vrot.lane.b32.xlu0 %v248, 8
    %v287 = vpop.permute.xlu0 %286
    %288 = vrot.lane.b32.xlu0 %v249, 8
    %v289 = vpop.permute.xlu0 %288
    %290 = vrot.lane.b32.xlu0 %v250, 8
    %v291 = vpop.permute.xlu0 %290
    %292 = vrot.lane.b32.xlu0 %v251, 8
    %v293 = vpop.permute.xlu0 %292
    %294 = vrot.lane.b32.xlu0 %v252, 8
    %v295 = vpop.permute.xlu0 %294
    %296 = vrot.lane.b32.xlu0 %v253, 8
    %v297 = vpop.permute.xlu0 %296
    %298 = vrot.lane.b32.xlu0 %v254, 8
    %v299 = vpop.permute.xlu0 %298
    %v315 = vmax.f32 %v133, %v271
    %v316 = vmax.f32 %v273, %v275
    %v317 = vmax.f32 %v277, %v279
    %v318 = vmax.f32 %v281, %v283
    %v319 = vmax.f32 %v285, %v287
    %v320 = vmax.f32 %v289, %v291
    %v321 = vmax.f32 %v293, %v295
    %v322 = vmax.f32 %v297, %v299
    %v323 = vperm.slane %v49, 0
    %325 = vrot.lane.b32.xlu0 %v323, 40
    %v326 = vpop.permute.xlu0 %325
    %v328 = vadd.f32 %v315, %v326
    %v329 = vadd.f32 %v316, %v326
    %v330 = vadd.f32 %v317, %v326
    %v331 = vadd.f32 %v318, %v326
    %v332 = vadd.f32 %v319, %v326
    %v333 = vadd.f32 %v320, %v326
    %v334 = vadd.f32 %v321, %v326
    %v335 = vadd.f32 %v322, %v326
    %v336 = vmax.f32 %v328, 0.0
    %v337 = vmax.f32 %v329, 0.0
    %v338 = vmax.f32 %v330, 0.0
    %v339 = vmax.f32 %v331, 0.0
    %v340 = vmax.f32 %v332, 0.0
    %v341 = vmax.f32 %v333, 0.0
    %v342 = vmax.f32 %v334, 0.0
    %v343 = vmax.f32 %v335, 0.0
    %v344 = vperm.slane %v49, 1
    %353 = vrot.lane.b32.xlu0 %v336, 120
    %v354 = vpop.permute.xlu0 %353
    %355 = vrot.lane.b32.xlu0 %v337, 120
    %v356 = vpop.permute.xlu0 %355
    %357 = vrot.lane.b32.xlu0 %v338, 120
    %v358 = vpop.permute.xlu0 %357
    %359 = vrot.lane.b32.xlu0 %v339, 120
    %v360 = vpop.permute.xlu0 %359
    %361 = vrot.lane.b32.xlu0 %v340, 120
    %v362 = vpop.permute.xlu0 %361
    %363 = vrot.lane.b32.xlu0 %v341, 120
    %v364 = vpop.permute.xlu0 %363
    %365 = vrot.lane.b32.xlu0 %v342, 120
    %v366 = vpop.permute.xlu0 %365
    %367 = vrot.lane.b32.xlu0 %v343, 120
    %v368 = vpop.permute.xlu0 %367
    %370 = vrot.lane.b32.xlu0 %v344, 32
    %v371 = vpop.permute.xlu0 %370
    %vm373 = vcmask 64512
    %v374 = vsel %vm373, %v354, 0
    %v376 = vsel %vm373, %v356, 0
    %v378 = vsel %vm373, %v358, 0
    %v380 = vsel %vm373, %v360, 0
    %v382 = vsel %vm373, %v362, 0
    %v384 = vsel %vm373, %v364, 0
    %v386 = vsel %vm373, %v366, 0
    %v388 = vsel %vm373, %v368, 0
    %390 = vmatpush.msra.mxu0 0.0
    %391 = vmatpush.msra.mxu0 0.0
    %392 = vmatpush.msra.mxu0 0.0
    %393 = vmatpush.msra.mxu0 0.0
    %394 = vmatpush.msra.mxu0 0.0
    %395 = vmatpush.msra.mxu0 0.0
    %396 = vmatpush.msra.mxu0 0.0
    %397 = vmatpush.msra.mxu0 0.0
    %398 = vmatpush.msra.mxu0 0.0
    %399 = vmatpush.msra.mxu0 0.0
    %400 = vmatpush.msra.mxu0 0.0
    %401 = vmatpush.msra.mxu0 0.0
    %402 = vmatpush.msra.mxu0 0.0
    %403 = vmatpush.msra.mxu0 0.0
    %404 = vmatpush.msra.mxu0 0.0
    %405 = vmatpush.msra.mxu0 %v48
    %406 = vmatmul.f32.gmra.mxu0 %v374
    %v407 = vpop.f32.mrf.mxu0
    %v408 = vadd.f32 %v371, %v407
    %409 = vmatmul.f32.gmra.mxu0 %v376
    %v410 = vpop.f32.mrf.mxu0
    %v411 = vadd.f32 %v371, %v410
    %412 = vmatmul.f32.gmra.mxu0 %v378
    %v413 = vpop.f32.mrf.mxu0
    %v414 = vadd.f32 %v371, %v413
    %415 = vmatmul.f32.gmra.mxu0 %v380
    %v416 = vpop.f32.mrf.mxu0
    %v417 = vadd.f32 %v371, %v416
    %418 = vmatmul.f32.gmra.mxu0 %v382
    %v419 = vpop.f32.mrf.mxu0
    %v420 = vadd.f32 %v371, %v419
    %421 = vmatmul.f32.gmra.mxu0 %v384
    %v422 = vpop.f32.mrf.mxu0
    %v423 = vadd.f32 %v371, %v422
    %424 = vmatmul.f32.gmra.mxu0 %v386
    %v425 = vpop.f32.mrf.mxu0
    %v426 = vadd.f32 %v371, %v425
    %427 = vmatmul.f32.gmra.mxu0 %v388
    %v428 = vpop.f32.mrf.mxu0
    %v429 = vadd.f32 %v371, %v428
    %430 = vdwg.mxu0
    %432 = vrot.lane.b32.xlu0 %v48, 96
    %v433 = vpop.permute.xlu0 %432
    %v436 = vsel %vm373, 0.0, 0
    %438 = vmatpush.msra.mxu0 0.0
    %439 = vmatpush.msra.mxu0 0.0
    %440 = vmatpush.msra.mxu0 0.0
    %441 = vmatpush.msra.mxu0 0.0
    %442 = vmatpush.msra.mxu0 0.0
    %443 = vmatpush.msra.mxu0 0.0
    %444 = vmatpush.msra.mxu0 0.0
    %445 = vmatpush.msra.mxu0 0.0
    %446 = vmatpush.msra.mxu0 0.0
    %447 = vmatpush.msra.mxu0 0.0
    %448 = vmatpush.msra.mxu0 0.0
    %449 = vmatpush.msra.mxu0 0.0
    %450 = vmatpush.msra.mxu0 0.0
    %451 = vmatpush.msra.mxu0 0.0
    %452 = vmatpush.msra.mxu0 0.0
    %453 = vmatpush.msra.mxu0 %v433
    %454 = vmatmul.f32.gmra.mxu0 %v436
    %v455 = vpop.f32.mrf.mxu0
    %v456 = vadd.f32 0.0, %v455
    %457 = vdwg.mxu0
    %v458 = vadd.f32 %v408, %v456
    %v459 = vxor.u32 %v458, 2147483648
    %v460 = vmul.f32 %v459, 1.442695
    %v461 = vpow.pop %v460
    %v462 = vadd.f32 %v461, 1.0
    %v463 = vrcp.pop %v462
    %v464 = vmul.f32 %v462, %v463
    %v465 = vsub.f32 1.0, %v464
    %v466 = vmul.f32 %v463, %v465
    %v467 = vadd.f32 %v463, %v466
    %vm468 = vweird.f32 %v462
    %vm469 = vweird.f32 %v463
    %vm470 = vmor %vm468, %vm469
    %v471 = vsel %vm470, %v463, %v467
    %v472 = vand.u32 2147483647, %v462
    %vm473 = vcmp.eq.f32.partialorder %v472, 8.507059e+37
    %v474 = vand.u32 %v462, 2147483648
    %v475 = vor.u32 1.1754944e-38, %v474
    %v476 = vsel %vm473, %v475, %v471
    %v477 = vmul.f32 1.0, %v476
    %v478 = vtanh.pop %v458
    %v479 = vmul.f32 %v477, 0.0
    %481 = vrot.lane.b32.xlu0 %v478, 112
    %v482 = vpop.permute.xlu0 %481
    %v484 = vmul.f32 %v477, %v482
    %486 = vrot.lane.b32.xlu0 %v484, 8
    %v487 = vpop.permute.xlu0 %486
    %v489 = vadd.f32 %v479, %v487
    %v490 = vtanh.pop %v489
    %492 = vrot.lane.b32.xlu0 %v490, 16
    %v493 = vpop.permute.xlu0 %492
    %v495 = vmul.f32 %v477, %v493
    %497 = vrot.lane.b32.xlu0 %v495, 104
    %v498 = vpop.permute.xlu0 %497
    %500 = vst.msk [vmem:[#allocation2] sm:$0xff] %vm373, %v498
    %v501 = vsel %vm373, %v498, 0
    %503 = vmatpush.msra.mxu0 0.0
    %504 = vmatpush.msra.mxu0 0.0
    %505 = vmatpush.msra.mxu0 0.0
    %506 = vmatpush.msra.mxu0 0.0
    %507 = vmatpush.msra.mxu0 0.0
    %508 = vmatpush.msra.mxu0 0.0
    %509 = vmatpush.msra.mxu0 0.0
    %510 = vmatpush.msra.mxu0 0.0
    %511 = vmatpush.msra.mxu0 0.0
    %512 = vmatpush.msra.mxu0 0.0
    %513 = vmatpush.msra.mxu0 0.0
    %514 = vmatpush.msra.mxu0 0.0
    %515 = vmatpush.msra.mxu0 0.0
    %516 = vmatpush.msra.mxu0 0.0
    %517 = vmatpush.msra.mxu0 0.0
    %518 = vmatpush.msra.mxu0 %v433
    %519 = vmatmul.f32.gmra.mxu0 %v501
    %v520 = vpop.f32.mrf.mxu0
    %v521 = vadd.f32 0.0, %v520
    %522 = vdwg.mxu0
    %v523 = vadd.f32 %v411, %v521
    %v524 = vxor.u32 %v523, 2147483648
    %v525 = vmul.f32 %v524, 1.442695
    %v526 = vpow.pop %v525
    %v527 = vadd.f32 %v526, 1.0
    %v528 = vrcp.pop %v527
    %v529 = vmul.f32 %v527, %v528
    %v530 = vsub.f32 1.0, %v529
    %v531 = vmul.f32 %v528, %v530
    %v532 = vadd.f32 %v528, %v531
    %vm533 = vweird.f32 %v527
    %vm534 = vweird.f32 %v528
    %vm535 = vmor %vm533, %vm534
    %v536 = vsel %vm535, %v528, %v532
    %v537 = vand.u32 2147483647, %v527
    %vm538 = vcmp.eq.f32.partialorder %v537, 8.507059e+37
    %v539 = vand.u32 %v527, 2147483648
    %v540 = vor.u32 1.1754944e-38, %v539
    %v541 = vsel %vm538, %v540, %v536
    %v542 = vmul.f32 1.0, %v541
    %v543 = vtanh.pop %v523
    %v544 = vmul.f32 %v542, %v489
    %546 = vrot.lane.b32.xlu0 %v543, 112
    %v547 = vpop.permute.xlu0 %546
    %v549 = vmul.f32 %v542, %v547
    %551 = vrot.lane.b32.xlu0 %v549, 8
    %v552 = vpop.permute.xlu0 %551
    %v554 = vadd.f32 %v544, %v552
    %v555 = vtanh.pop %v554
    %557 = vrot.lane.b32.xlu0 %v555, 16
    %v558 = vpop.permute.xlu0 %557
    %v560 = vmul.f32 %v542, %v558
    %562 = vrot.lane.b32.xlu0 %v560, 104
    %v563 = vpop.permute.xlu0 %562
    %s565 = scalar_lea.vmem [#allocation2], 8
    %566 = vst.msk [vmem:[%s565] sm:$0xff] %vm373, %v563
    %v567 = vsel %vm373, %v563, 0
    %569 = vmatpush.msra.mxu0 0.0
    %570 = vmatpush.msra.mxu0 0.0
    %571 = vmatpush.msra.mxu0 0.0
    %572 = vmatpush.msra.mxu0 0.0
    %573 = vmatpush.msra.mxu0 0.0
    %574 = vmatpush.msra.mxu0 0.0
    %575 = vmatpush.msra.mxu0 0.0
    %576 = vmatpush.msra.mxu0 0.0
    %577 = vmatpush.msra.mxu0 0.0
    %578 = vmatpush.msra.mxu0 0.0
    %579 = vmatpush.msra.mxu0 0.0
    %580 = vmatpush.msra.mxu0 0.0
    %581 = vmatpush.msra.mxu0 0.0
    %582 = vmatpush.msra.mxu0 0.0
    %583 = vmatpush.msra.mxu0 0.0
    %584 = vmatpush.msra.mxu0 %v433
    %585 = vmatmul.f32.gmra.mxu0 %v567
    %v586 = vpop.f32.mrf.mxu0
    %v587 = vadd.f32 0.0, %v586
    %588 = vdwg.mxu0
    %v589 = vadd.f32 %v414, %v587
    %v590 = vxor.u32 %v589, 2147483648
    %v591 = vmul.f32 %v590, 1.442695
    %v592 = vpow.pop %v591
    %v593 = vadd.f32 %v592, 1.0
    %v594 = vrcp.pop %v593
    %v595 = vmul.f32 %v593, %v594
    %v596 = vsub.f32 1.0, %v595
    %v597 = vmul.f32 %v594, %v596
    %v598 = vadd.f32 %v594, %v597
    %vm599 = vweird.f32 %v593
    %vm600 = vweird.f32 %v594
    %vm601 = vmor %vm599, %vm600
    %v602 = vsel %vm601, %v594, %v598
    %v603 = vand.u32 2147483647, %v593
    %vm604 = vcmp.eq.f32.partialorder %v603, 8.507059e+37
    %v605 = vand.u32 %v593, 2147483648
    %v606 = vor.u32 1.1754944e-38, %v605
    %v607 = vsel %vm604, %v606, %v602
    %v608 = vmul.f32 1.0, %v607
    %v609 = vtanh.pop %v589
    %v610 = vmul.f32 %v608, %v554
    %612 = vrot.lane.b32.xlu0 %v609, 112
    %v613 = vpop.permute.xlu0 %612
    %v615 = vmul.f32 %v608, %v613
    %617 = vrot.lane.b32.xlu0 %v615, 8
    %v618 = vpop.permute.xlu0 %617
    %v620 = vadd.f32 %v610, %v618
    %v621 = vtanh.pop %v620
    %623 = vrot.lane.b32.xlu0 %v621, 16
    %v624 = vpop.permute.xlu0 %623
    %v626 = vmul.f32 %v608, %v624
    %628 = vrot.lane.b32.xlu0 %v626, 104
    %v629 = vpop.permute.xlu0 %628
    %s631 = scalar_lea.vmem [#allocation2], 16
    %632 = vst.msk [vmem:[%s631] sm:$0xff] %vm373, %v629
    %v633 = vsel %vm373, %v629, 0
    %635 = vmatpush.msra.mxu0 0.0
    %636 = vmatpush.msra.mxu0 0.0
    %637 = vmatpush.msra.mxu0 0.0
    %638 = vmatpush.msra.mxu0 0.0
    %639 = vmatpush.msra.mxu0 0.0
    %640 = vmatpush.msra.mxu0 0.0
    %641 = vmatpush.msra.mxu0 0.0
    %642 = vmatpush.msra.mxu0 0.0
    %643 = vmatpush.msra.mxu0 0.0
    %644 = vmatpush.msra.mxu0 0.0
    %645 = vmatpush.msra.mxu0 0.0
    %646 = vmatpush.msra.mxu0 0.0
    %647 = vmatpush.msra.mxu0 0.0
    %648 = vmatpush.msra.mxu0 0.0
    %649 = vmatpush.msra.mxu0 0.0
    %650 = vmatpush.msra.mxu0 %v433
    %651 = vmatmul.f32.gmra.mxu0 %v633
    %v652 = vpop.f32.mrf.mxu0
    %v653 = vadd.f32 0.0, %v652
    %654 = vdwg.mxu0
    %v655 = vadd.f32 %v417, %v653
    %v656 = vxor.u32 %v655, 2147483648
    %v657 = vmul.f32 %v656, 1.442695
    %v658 = vpow.pop %v657
    %v659 = vadd.f32 %v658, 1.0
    %v660 = vrcp.pop %v659
    %v661 = vmul.f32 %v659, %v660
    %v662 = vsub.f32 1.0, %v661
    %v663 = vmul.f32 %v660, %v662
    %v664 = vadd.f32 %v660, %v663
    %vm665 = vweird.f32 %v659
    %vm666 = vweird.f32 %v660
    %vm667 = vmor %vm665, %vm666
    %v668 = vsel %vm667, %v660, %v664
    %v669 = vand.u32 2147483647, %v659
    %vm670 = vcmp.eq.f32.partialorder %v669, 8.507059e+37
    %v671 = vand.u32 %v659, 2147483648
    %v672 = vor.u32 1.1754944e-38, %v671
    %v673 = vsel %vm670, %v672, %v668
    %v674 = vmul.f32 1.0, %v673
    %v675 = vtanh.pop %v655
    %v676 = vmul.f32 %v674, %v620
    %678 = vrot.lane.b32.xlu0 %v675, 112
    %v679 = vpop.permute.xlu0 %678
    %v681 = vmul.f32 %v674, %v679
    %683 = vrot.lane.b32.xlu0 %v681, 8
    %v684 = vpop.permute.xlu0 %683
    %v686 = vadd.f32 %v676, %v684
    %v687 = vtanh.pop %v686
    %689 = vrot.lane.b32.xlu0 %v687, 16
    %v690 = vpop.permute.xlu0 %689
    %v692 = vmul.f32 %v674, %v690
    %694 = vrot.lane.b32.xlu0 %v692, 104
    %v695 = vpop.permute.xlu0 %694
    %s697 = scalar_lea.vmem [#allocation2], 24
    %698 = vst.msk [vmem:[%s697] sm:$0xff] %vm373, %v695
    %v699 = vsel %vm373, %v695, 0
    %701 = vmatpush.msra.mxu0 0.0
    %702 = vmatpush.msra.mxu0 0.0
    %703 = vmatpush.msra.mxu0 0.0
    %704 = vmatpush.msra.mxu0 0.0
    %705 = vmatpush.msra.mxu0 0.0
    %706 = vmatpush.msra.mxu0 0.0
    %707 = vmatpush.msra.mxu0 0.0
    %708 = vmatpush.msra.mxu0 0.0
    %709 = vmatpush.msra.mxu0 0.0
    %710 = vmatpush.msra.mxu0 0.0
    %711 = vmatpush.msra.mxu0 0.0
    %712 = vmatpush.msra.mxu0 0.0
    %713 = vmatpush.msra.mxu0 0.0
    %714 = vmatpush.msra.mxu0 0.0
    %715 = vmatpush.msra.mxu0 0.0
    %716 = vmatpush.msra.mxu0 %v433
    %717 = vmatmul.f32.gmra.mxu0 %v699
    %v718 = vpop.f32.mrf.mxu0
    %v719 = vadd.f32 0.0, %v718
    %720 = vdwg.mxu0
    %v721 = vadd.f32 %v420, %v719
    %v722 = vxor.u32 %v721, 2147483648
    %v723 = vmul.f32 %v722, 1.442695
    %v724 = vpow.pop %v723
    %v725 = vadd.f32 %v724, 1.0
    %v726 = vrcp.pop %v725
    %v727 = vmul.f32 %v725, %v726
    %v728 = vsub.f32 1.0, %v727
    %v729 = vmul.f32 %v726, %v728
    %v730 = vadd.f32 %v726, %v729
    %vm731 = vweird.f32 %v725
    %vm732 = vweird.f32 %v726
    %vm733 = vmor %vm731, %vm732
    %v734 = vsel %vm733, %v726, %v730
    %v735 = vand.u32 2147483647, %v725
    %vm736 = vcmp.eq.f32.partialorder %v735, 8.507059e+37
    %v737 = vand.u32 %v725, 2147483648
    %v738 = vor.u32 1.1754944e-38, %v737
    %v739 = vsel %vm736, %v738, %v734
    %v740 = vmul.f32 1.0, %v739
    %v741 = vtanh.pop %v721
    %v742 = vmul.f32 %v740, %v686
    %744 = vrot.lane.b32.xlu0 %v741, 112
    %v745 = vpop.permute.xlu0 %744
    %v747 = vmul.f32 %v740, %v745
    %749 = vrot.lane.b32.xlu0 %v747, 8
    %v750 = vpop.permute.xlu0 %749
    %v752 = vadd.f32 %v742, %v750
    %v753 = vtanh.pop %v752
    %755 = vrot.lane.b32.xlu0 %v753, 16
    %v756 = vpop.permute.xlu0 %755
    %v758 = vmul.f32 %v740, %v756
    %760 = vrot.lane.b32.xlu0 %v758, 104
    %v761 = vpop.permute.xlu0 %760
    %s763 = scalar_lea.vmem [#allocation2], 32
    %764 = vst.msk [vmem:[%s763] sm:$0xff] %vm373, %v761
    %v765 = vsel %vm373, %v761, 0
    %767 = vmatpush.msra.mxu0 0.0
    %768 = vmatpush.msra.mxu0 0.0
    %769 = vmatpush.msra.mxu0 0.0
    %770 = vmatpush.msra.mxu0 0.0
    %771 = vmatpush.msra.mxu0 0.0
    %772 = vmatpush.msra.mxu0 0.0
    %773 = vmatpush.msra.mxu0 0.0
    %774 = vmatpush.msra.mxu0 0.0
    %775 = vmatpush.msra.mxu0 0.0
    %776 = vmatpush.msra.mxu0 0.0
    %777 = vmatpush.msra.mxu0 0.0
    %778 = vmatpush.msra.mxu0 0.0
    %779 = vmatpush.msra.mxu0 0.0
    %780 = vmatpush.msra.mxu0 0.0
    %781 = vmatpush.msra.mxu0 0.0
    %782 = vmatpush.msra.mxu0 %v433
    %783 = vmatmul.f32.gmra.mxu0 %v765
    %v784 = vpop.f32.mrf.mxu0
    %v785 = vadd.f32 0.0, %v784
    %786 = vdwg.mxu0
    %v787 = vadd.f32 %v423, %v785
    %v788 = vxor.u32 %v787, 2147483648
    %v789 = vmul.f32 %v788, 1.442695
    %v790 = vpow.pop %v789
    %v791 = vadd.f32 %v790, 1.0
    %v792 = vrcp.pop %v791
    %v793 = vmul.f32 %v791, %v792
    %v794 = vsub.f32 1.0, %v793
    %v795 = vmul.f32 %v792, %v794
    %v796 = vadd.f32 %v792, %v795
    %vm797 = vweird.f32 %v791
    %vm798 = vweird.f32 %v792
    %vm799 = vmor %vm797, %vm798
    %v800 = vsel %vm799, %v792, %v796
    %v801 = vand.u32 2147483647, %v791
    %vm802 = vcmp.eq.f32.partialorder %v801, 8.507059e+37
    %v803 = vand.u32 %v791, 2147483648
    %v804 = vor.u32 1.1754944e-38, %v803
    %v805 = vsel %vm802, %v804, %v800
    %v806 = vmul.f32 1.0, %v805
    %v807 = vtanh.pop %v787
    %v808 = vmul.f32 %v806, %v752
    %810 = vrot.lane.b32.xlu0 %v807, 112
    %v811 = vpop.permute.xlu0 %810
    %v813 = vmul.f32 %v806, %v811
    %815 = vrot.lane.b32.xlu0 %v813, 8
    %v816 = vpop.permute.xlu0 %815
    %v818 = vadd.f32 %v808, %v816
    %v819 = vtanh.pop %v818
    %821 = vrot.lane.b32.xlu0 %v819, 16
    %v822 = vpop.permute.xlu0 %821
    %v824 = vmul.f32 %v806, %v822
    %826 = vrot.lane.b32.xlu0 %v824, 104
    %v827 = vpop.permute.xlu0 %826
    %s829 = scalar_lea.vmem [#allocation2], 40
    %830 = vst.msk [vmem:[%s829] sm:$0xff] %vm373, %v827
    %v831 = vsel %vm373, %v827, 0
    %833 = vmatpush.msra.mxu0 0.0
    %834 = vmatpush.msra.mxu0 0.0
    %835 = vmatpush.msra.mxu0 0.0
    %836 = vmatpush.msra.mxu0 0.0
    %837 = vmatpush.msra.mxu0 0.0
    %838 = vmatpush.msra.mxu0 0.0
    %839 = vmatpush.msra.mxu0 0.0
    %840 = vmatpush.msra.mxu0 0.0
    %841 = vmatpush.msra.mxu0 0.0
    %842 = vmatpush.msra.mxu0 0.0
    %843 = vmatpush.msra.mxu0 0.0
    %844 = vmatpush.msra.mxu0 0.0
    %845 = vmatpush.msra.mxu0 0.0
    %846 = vmatpush.msra.mxu0 0.0
    %847 = vmatpush.msra.mxu0 0.0
    %848 = vmatpush.msra.mxu0 %v433
    %849 = vmatmul.f32.gmra.mxu0 %v831
    %v850 = vpop.f32.mrf.mxu0
    %v851 = vadd.f32 0.0, %v850
    %852 = vdwg.mxu0
    %v853 = vadd.f32 %v426, %v851
    %v854 = vxor.u32 %v853, 2147483648
    %v855 = vmul.f32 %v854, 1.442695
    %v856 = vpow.pop %v855
    %v857 = vadd.f32 %v856, 1.0
    %v858 = vrcp.pop %v857
    %v859 = vmul.f32 %v857, %v858
    %v860 = vsub.f32 1.0, %v859
    %v861 = vmul.f32 %v858, %v860
    %v862 = vadd.f32 %v858, %v861
    %vm863 = vweird.f32 %v857
    %vm864 = vweird.f32 %v858
    %vm865 = vmor %vm863, %vm864
    %v866 = vsel %vm865, %v858, %v862
    %v867 = vand.u32 2147483647, %v857
    %vm868 = vcmp.eq.f32.partialorder %v867, 8.507059e+37
    %v869 = vand.u32 %v857, 2147483648
    %v870 = vor.u32 1.1754944e-38, %v869
    %v871 = vsel %vm868, %v870, %v866
    %v872 = vmul.f32 1.0, %v871
    %v873 = vtanh.pop %v853
    %v874 = vmul.f32 %v872, %v818
    %876 = vrot.lane.b32.xlu0 %v873, 112
    %v877 = vpop.permute.xlu0 %876
    %v879 = vmul.f32 %v872, %v877
    %881 = vrot.lane.b32.xlu0 %v879, 8
    %v882 = vpop.permute.xlu0 %881
    %v884 = vadd.f32 %v874, %v882
    %v885 = vtanh.pop %v884
    %887 = vrot.lane.b32.xlu0 %v885, 16
    %v888 = vpop.permute.xlu0 %887
    %v890 = vmul.f32 %v872, %v888
    %892 = vrot.lane.b32.xlu0 %v890, 104
    %v893 = vpop.permute.xlu0 %892
    %s895 = scalar_lea.vmem [#allocation2], 48
    %896 = vst.msk [vmem:[%s895] sm:$0xff] %vm373, %v893
    %v897 = vsel %vm373, %v893, 0
    %899 = vmatpush.msra.mxu0 0.0
    %900 = vmatpush.msra.mxu0 0.0
    %901 = vmatpush.msra.mxu0 0.0
    %902 = vmatpush.msra.mxu0 0.0
    %903 = vmatpush.msra.mxu0 0.0
    %904 = vmatpush.msra.mxu0 0.0
    %905 = vmatpush.msra.mxu0 0.0
    %906 = vmatpush.msra.mxu0 0.0
    %907 = vmatpush.msra.mxu0 0.0
    %908 = vmatpush.msra.mxu0 0.0
    %909 = vmatpush.msra.mxu0 0.0
    %910 = vmatpush.msra.mxu0 0.0
    %911 = vmatpush.msra.mxu0 0.0
    %912 = vmatpush.msra.mxu0 0.0
    %913 = vmatpush.msra.mxu0 0.0
    %914 = vmatpush.msra.mxu0 %v433
    %915 = vmatmul.f32.gmra.mxu0 %v897
    %v916 = vpop.f32.mrf.mxu0
    %v917 = vadd.f32 0.0, %v916
    %918 = vdwg.mxu0
    %v919 = vadd.f32 %v429, %v917
    %v920 = vxor.u32 %v919, 2147483648
    %v921 = vmul.f32 %v920, 1.442695
    %v922 = vpow.pop %v921
    %v923 = vadd.f32 %v922, 1.0
    %v924 = vrcp.pop %v923
    %v925 = vmul.f32 %v923, %v924
    %v926 = vsub.f32 1.0, %v925
    %v927 = vmul.f32 %v924, %v926
    %v928 = vadd.f32 %v924, %v927
    %vm929 = vweird.f32 %v923
    %vm930 = vweird.f32 %v924
    %vm931 = vmor %vm929, %vm930
    %v932 = vsel %vm931, %v924, %v928
    %v933 = vand.u32 2147483647, %v923
    %vm934 = vcmp.eq.f32.partialorder %v933, 8.507059e+37
    %v935 = vand.u32 %v923, 2147483648
    %v936 = vor.u32 1.1754944e-38, %v935
    %v937 = vsel %vm934, %v936, %v932
    %v938 = vmul.f32 1.0, %v937
    %v939 = vtanh.pop %v919
    %v940 = vmul.f32 %v938, %v884
    %942 = vrot.lane.b32.xlu0 %v939, 112
    %v943 = vpop.permute.xlu0 %942
    %v945 = vmul.f32 %v938, %v943
    %947 = vrot.lane.b32.xlu0 %v945, 8
    %v948 = vpop.permute.xlu0 %947
    %v950 = vadd.f32 %v940, %v948
    %v951 = vtanh.pop %v950
    %953 = vrot.lane.b32.xlu0 %v951, 16
    %v954 = vpop.permute.xlu0 %953
    %v956 = vmul.f32 %v938, %v954
    %958 = vrot.lane.b32.xlu0 %v956, 104
    %v959 = vpop.permute.xlu0 %958
    %s961 = scalar_lea.vmem [#allocation2], 56
    %962 = vst.msk [vmem:[%s961] sm:$0xff] %vm373, %v959
    %v963 = vld [vmem:[#allocation2] sm:$0xff]
    %v964 = vld [vmem:[#allocation2 + $0x8] sm:$0xff]
    %v965 = vld [vmem:[#allocation2 + $0x10] sm:$0xff]
    %v966 = vld [vmem:[#allocation2 + $0x18] sm:$0xff]
    %v967 = vld [vmem:[#allocation2 + $0x20] sm:$0xff]
    %v968 = vld [vmem:[#allocation2 + $0x28] sm:$0xff]
    %v969 = vld [vmem:[#allocation2 + $0x30] sm:$0xff]
    %v970 = vld [vmem:[#allocation2 + $0x38] sm:$0xff]
    %v972 = vsel %vm373, %v963, 0
    %v975 = vsel %vm373, %v964, 0
    %v978 = vsel %vm373, %v965, 0
    %v981 = vsel %vm373, %v966, 0
    %v984 = vsel %vm373, %v967, 0
    %v987 = vsel %vm373, %v968, 0
    %v990 = vsel %vm373, %v969, 0
    %v993 = vsel %vm373, %v970, 0
    %995 = vmatpush.msra.mxu0 0.0
    %996 = vmatpush.msra.mxu0 0.0
    %997 = vmatpush.msra.mxu0 0.0
    %998 = vmatpush.msra.mxu0 0.0
    %999 = vmatpush.msra.mxu0 0.0
    %1000 = vmatpush.msra.mxu0 0.0
    %1001 = vmatpush.msra.mxu0 0.0
    %1002 = vmatpush.msra.mxu0 0.0
    %1003 = vmatpush.msra.mxu0 0.0
    %1004 = vmatpush.msra.mxu0 0.0
    %1005 = vmatpush.msra.mxu0 0.0
    %1006 = vmatpush.msra.mxu0 0.0
    %1007 = vmatpush.msra.mxu0 0.0
    %1008 = vmatpush.msra.mxu0 0.0
    %1009 = vmatpush.msra.mxu0 0.0
    %1010 = vmatpush.msra.mxu0 %v49
    %1011 = vmatmul.f32.gmra.mxu0 %v972
    %v1012 = vpop.f32.mrf.mxu0
    %v1013 = vadd.f32 0.0, %v1012
    %1014 = vmatmul.f32.gmra.mxu0 %v975
    %v1015 = vpop.f32.mrf.mxu0
    %v1016 = vadd.f32 0.0, %v1015
    %1017 = vmatmul.f32.gmra.mxu0 %v978
    %v1018 = vpop.f32.mrf.mxu0
    %v1019 = vadd.f32 0.0, %v1018
    %1020 = vmatmul.f32.gmra.mxu0 %v981
    %v1021 = vpop.f32.mrf.mxu0
    %v1022 = vadd.f32 0.0, %v1021
    %1023 = vmatmul.f32.gmra.mxu0 %v984
    %v1024 = vpop.f32.mrf.mxu0
    %v1025 = vadd.f32 0.0, %v1024
    %1026 = vmatmul.f32.gmra.mxu0 %v987
    %v1027 = vpop.f32.mrf.mxu0
    %v1028 = vadd.f32 0.0, %v1027
    %1029 = vmatmul.f32.gmra.mxu0 %v990
    %v1030 = vpop.f32.mrf.mxu0
    %v1031 = vadd.f32 0.0, %v1030
    %1032 = vmatmul.f32.gmra.mxu0 %v993
    %v1033 = vpop.f32.mrf.mxu0
    %v1034 = vadd.f32 0.0, %v1033
    %1035 = vdwg.mxu0
    %1043 = vrot.lane.b32.xlu0 %v1016, 96
    %v1044 = vpop.permute.xlu0 %1043
    %1045 = vrot.lane.b32.xlu0 %v1019, 96
    %v1046 = vpop.permute.xlu0 %1045
    %1047 = vrot.lane.b32.xlu0 %v1022, 96
    %v1048 = vpop.permute.xlu0 %1047
    %1049 = vrot.lane.b32.xlu0 %v1025, 96
    %v1050 = vpop.permute.xlu0 %1049
    %1051 = vrot.lane.b32.xlu0 %v1028, 96
    %v1052 = vpop.permute.xlu0 %1051
    %1053 = vrot.lane.b32.xlu0 %v1031, 96
    %v1054 = vpop.permute.xlu0 %1053
    %1055 = vrot.lane.b32.xlu0 %v1034, 96
    %v1056 = vpop.permute.xlu0 %1055
    %1057 = vrot.lane.b32.xlu0 0.0, 96
    %v1058 = vpop.permute.xlu0 %1057
    %v1067 = vadd.f32 %v1013, %v1044
    %v1068 = vadd.f32 %v1016, %v1046
    %v1069 = vadd.f32 %v1019, %v1048
    %v1070 = vadd.f32 %v1022, %v1050
    %v1071 = vadd.f32 %v1025, %v1052
    %v1072 = vadd.f32 %v1028, %v1054
    %v1073 = vadd.f32 %v1031, %v1056
    %v1074 = vadd.f32 %v1034, %v1058
    %1083 = vrot.lane.b32.xlu0 %v1067, 96
    %v1084 = vpop.permute.xlu0 %1083
    %1085 = vrot.lane.b32.xlu0 %v1068, 96
    %v1086 = vpop.permute.xlu0 %1085
    %1087 = vrot.lane.b32.xlu0 %v1069, 96
    %v1088 = vpop.permute.xlu0 %1087
    %1089 = vrot.lane.b32.xlu0 %v1070, 96
    %v1090 = vpop.permute.xlu0 %1089
    %1091 = vrot.lane.b32.xlu0 %v1071, 96
    %v1092 = vpop.permute.xlu0 %1091
    %1093 = vrot.lane.b32.xlu0 %v1072, 96
    %v1094 = vpop.permute.xlu0 %1093
    %1095 = vrot.lane.b32.xlu0 %v1073, 96
    %v1096 = vpop.permute.xlu0 %1095
    %1097 = vrot.lane.b32.xlu0 %v1074, 96
    %v1098 = vpop.permute.xlu0 %1097
    %v1107 = vperm.slane %v49, 2
    %1109 = vrot.lane.b32.xlu0 %v1107, 32
    %v1110 = vpop.permute.xlu0 %1109
    %v1112 = vadd.f32 %v1013, %v1110
    %v1113 = vadd.f32 %v1084, %v1110
    %v1114 = vadd.f32 %v1016, %v1110
    %v1115 = vadd.f32 %v1086, %v1110
    %v1116 = vadd.f32 %v1019, %v1110
    %v1117 = vadd.f32 %v1088, %v1110
    %v1118 = vadd.f32 %v1022, %v1110
    %v1119 = vadd.f32 %v1090, %v1110
    %v1120 = vadd.f32 %v1025, %v1110
    %v1121 = vadd.f32 %v1092, %v1110
    %v1122 = vadd.f32 %v1028, %v1110
    %v1123 = vadd.f32 %v1094, %v1110
    %v1124 = vadd.f32 %v1031, %v1110
    %v1125 = vadd.f32 %v1096, %v1110
    %v1126 = vadd.f32 %v1034, %v1110
    %v1127 = vadd.f32 %v1098, %v1110
    %v1128 = vmax.f32 %v1112, 0.0
    %v1129 = vmax.f32 %v1113, 0.0
    %v1130 = vmax.f32 %v1114, 0.0
    %v1131 = vmax.f32 %v1115, 0.0
    %v1132 = vmax.f32 %v1116, 0.0
    %v1133 = vmax.f32 %v1117, 0.0
    %v1134 = vmax.f32 %v1118, 0.0
    %v1135 = vmax.f32 %v1119, 0.0
    %v1136 = vmax.f32 %v1120, 0.0
    %v1137 = vmax.f32 %v1121, 0.0
    %v1138 = vmax.f32 %v1122, 0.0
    %v1139 = vmax.f32 %v1123, 0.0
    %v1140 = vmax.f32 %v1124, 0.0
    %v1141 = vmax.f32 %v1125, 0.0
    %v1142 = vmax.f32 %v1126, 0.0
    %v1143 = vmax.f32 %v1127, 0.0
    %1144 = vst.msk [vmem:[#allocation8] sm:$0xff] %vm66, %v1128
    %1145 = vst.msk [vmem:[#allocation8 + $0x8] sm:$0xff] %vm66, %v1129
    %1146 = vst.msk [vmem:[#allocation8 + $0x10] sm:$0xff] %vm66, %v1130
    %1147 = vst.msk [vmem:[#allocation8 + $0x18] sm:$0xff] %vm66, %v1131
    %1148 = vst.msk [vmem:[#allocation8 + $0x20] sm:$0xff] %vm66, %v1132
    %1149 = vst.msk [vmem:[#allocation8 + $0x28] sm:$0xff] %vm66, %v1133
    %1150 = vst.msk [vmem:[#allocation8 + $0x30] sm:$0xff] %vm66, %v1134
    %1151 = vst.msk [vmem:[#allocation8 + $0x38] sm:$0xff] %vm66, %v1135
    %1152 = vst.msk [vmem:[#allocation8 + $0x40] sm:$0xff] %vm66, %v1136
    %1153 = vst.msk [vmem:[#allocation8 + $0x48] sm:$0xff] %vm66, %v1137
    %1154 = vst.msk [vmem:[#allocation8 + $0x50] sm:$0xff] %vm66, %v1138
    %1155 = vst.msk [vmem:[#allocation8 + $0x58] sm:$0xff] %vm66, %v1139
    %1156 = vst.msk [vmem:[#allocation8 + $0x60] sm:$0xff] %vm66, %v1140
    %1157 = vst.msk [vmem:[#allocation8 + $0x68] sm:$0xff] %vm66, %v1141
    %1158 = vst.msk [vmem:[#allocation8 + $0x70] sm:$0xff] %vm66, %v1142
    %1159 = vst.msk [vmem:[#allocation8 + $0x78] sm:$0xff] %vm66, %v1143
    // Predicated region
    $region18: #{tpu_custom_call.1} parent=1 // pred_check
      _
    $region19: #{tpu_custom_call.1} parent=1 // pred_check_branch
      %1161 = sbr.rel (0) target = $region21
    $region20: #{tpu_custom_call.1} parent=1 // pred_region
      %1163 = vsyncadd [#allocation5], 0
      %s1164 = sshll.u32 [#allocation8], 4
      %s1165 = int_to_ptr.vmem [resolvable:$true] %s1164
      %s1166 = sshll.u32 %s2, 4
      %s1167 = int_to_ptr.hbm [resolvable:$true] %s1166
      %1172 = dma.vmem_to_hbm [thread:$0]  %s1165, 2048, %s1167, [#allocation5], 128, 128, 8
    $region21: #{tpu_custom_call.1} parent=1 // pred_fallthru
      _
    // Predicated region
    $region22: #{tpu_custom_call.1} parent=1 // pred_check
      _
    $region23: #{tpu_custom_call.1} parent=1 // pred_check_branch
      %1174 = sbr.rel (0) target = $region25
    $region24: #{tpu_custom_call.1} parent=1 // pred_region
      %1176 = dma.done [#allocation5], 2048
    $region25: #{tpu_custom_call.1} parent=1 // pred_fallthru
      _
    %1177 = vsyncpa [#allocation4], 1
    %1178 = vsyncpa [#allocation7], 1
    %1179 = vsyncpa [#allocation5], 1

</llo_original>
